<compile_context>
chip_gen: v6e
topology: v6e:2x2x1
jax: 0.10.0
libtpu: 0.0.40
codegen_flags: <defaults>
</compile_context>

<pallas_src>
import jax
import jax.numpy as jnp
from jax import lax
from jax.experimental import pallas as pl
from jax.experimental.pallas import tpu as pltpu

_NN = (((1,), (0,)), ((), ()))   # plain A @ B
_NT = (((1,), (1,)), ((), ()))   # A @ B.T (contract both operands on their last dim)
_HIGHEST = jax.lax.Precision.HIGHEST


def _crf_llh_kernel(em_ref, tags_ref, mask_ref, start_ref, end_ref,
                    trans_t_ref, exp_trans_t_ref, tmax_ref, eye_ref,
                    llh_ref,
                    alpha_sc, score_sc, prevtag_sc, lasttag_sc):
    """One (batch_tile, time_block) grid point of the fused CRF numerator/denominator."""
    lb = pl.program_id(1)                       # time-block index (innermost grid axis)
    n_lb = pl.num_programs(1)
    Lt = em_ref.shape[0]                        # timesteps handled by this grid point
    T, Bt = alpha_sc.shape

    # Hoisted per-grid-point constants (loop invariant; JAX does not CSE broadcasts).
    eye = eye_ref[...]                          # (T, T) exact {0,1} identity
    tag_iota = lax.broadcasted_iota(jnp.int32, (T, Bt), 0)
    start_col = start_ref[...]                  # (T, 1)
    end_col = end_ref[...]                      # (T, 1)
    trans_t = trans_t_ref[...]                  # (T, T) = transitions.T
    exp_trans_t = exp_trans_t_ref[...]          # (T, T) = exp(transitions - tmax).T
    tmax_col = tmax_ref[...]                    # (T, 1)
    tiny = jnp.float32(1.1754944e-38)           # underflow floor for log-matmul-exp

    def em_t_at(i):
        # (Bt, T) emissions tile -> (T, Bt).  The lane<->sublane transpose rides on the
        # idle MXU (identity @ em.T), so emissions stream in their natural (L, B, T)
        # HBM layout and no wrapper-side transpose pass is needed.
        return lax.dot_general(eye, em_ref[i], _NT,
                               preferred_element_type=jnp.float32,
                               precision=_HIGHEST)

    def one_hot(tag_row):                       # (1, Bt) int32 -> (T, Bt) f32
        return (tag_row == tag_iota).astype(jnp.float32)

    # -------- global step 0 (first time block only): initialize carried state --------
    @pl.when(lb == 0)
    def _init():
        em0 = em_t_at(0)                        # (T, Bt)
        tag0 = tags_ref[0]                      # (1, Bt)
        a0 = start_col + em0
        alpha_sc[...] = a0
        score_sc[...] = jnp.sum(one_hot(tag0) * a0, axis=0, keepdims=True)
        prevtag_sc[...] = tag0
        lasttag_sc[...] = tag0

    # -------- recursion over the Lt timesteps of this block (state carried in vregs) ----
    def step(i, carry):
        alpha, score, prev_tag, last_tag = carry
        # Global step 0 was consumed by _init(); force it to a no-op via a zero mask.
        m = jnp.where((lb == 0) & (i == 0), 0.0, mask_ref[i])      # (1, Bt) float {0,1}
        em_t = em_t_at(i)                                          # (T, Bt)
        tag_row = tags_ref[i]                                      # (1, Bt) int32
        oh = one_hot(tag_row)                                      # (T, Bt)
        oh_prev = one_hot(prev_tag)                                # (T, Bt)

        # Numerator: transitions[tags[l-1], tags[l]] gathered on the MXU —
        # (trans.T @ onehot(prev))[j, b] == transitions[prev_b, j].
        m_jb = lax.dot_general(trans_t, oh_prev, _NN,
                               preferred_element_type=jnp.float32,
                               precision=_HIGHEST)                 # (T, Bt)
        trans_sc = jnp.sum(m_jb * oh, axis=0, keepdims=True)       # (1, Bt)
        em_sc = jnp.sum(em_t * oh, axis=0, keepdims=True)          # (1, Bt)
        score = score + (trans_sc + em_sc) * m
        last_tag = jnp.where(m > 0., tag_row, last_tag)

        # Denominator: forward recursion in log-matmul-exp form (MXU does the B*T^2 sum).
        mx = jnp.max(alpha, axis=0, keepdims=True)                 # (1, Bt)
        p = lax.dot_general(exp_trans_t, jnp.exp(alpha - mx), _NN,
                            preferred_element_type=jnp.float32,
                            precision=_HIGHEST)                    # (T, Bt)
        new_alpha = mx + tmax_col + jnp.log(jnp.maximum(p, tiny)) + em_t
        alpha = jnp.where(m > 0., new_alpha, alpha)
        return alpha, score, tag_row, last_tag

    carry0 = (alpha_sc[...], score_sc[...], prevtag_sc[...], lasttag_sc[...])
    alpha, score, prev_tag, last_tag = lax.fori_loop(0, Lt, step, carry0)
    alpha_sc[...] = alpha
    score_sc[...] = score
    prevtag_sc[...] = prev_tag
    lasttag_sc[...] = last_tag

    # -------- last time block: end transitions + final logsumexp, lane-dense output ----
    @pl.when(lb == n_lb - 1)
    def _final():
        final = alpha + end_col                                    # (T, Bt)
        fmax = jnp.max(final, axis=0, keepdims=True)
        denom = fmax + jnp.log(jnp.sum(jnp.exp(final - fmax), axis=0, keepdims=True))
        end_sc = jnp.sum(one_hot(last_tag) * end_col, axis=0, keepdims=True)
        llh_ref[...] = score + end_sc - denom


def _num_tensorcores():
    """Best-effort TC-per-device heuristic (perf only; either branch is correct)."""
    try:
        kind = jax.devices()[0].device_kind.lower()
    except Exception:
        return 1
    if "v7" in kind or "v4" in kind or "v5p" in kind:
        return 2
    return 1


def _pick_batch_tile(B):
    """Batch tile Bt on the 128-lane axis.  Multi-TC chips get >=2 tiles when possible;
    single-TC chips get one maximally wide tile."""
    if B % 128 != 0:
        return B, 1                      # single full-batch tile; no padding copies needed
    cap = 1024
    if _num_tensorcores() >= 2 and B >= 256:
        cap = max(128, (B // 2) // 128 * 128)
    Bt = min(B, cap)
    while B % Bt != 0:
        Bt -= 128
    return Bt, B // Bt


def _pick_time_tile(L, Bt, T):
    """Timesteps per grid point: keep the double-buffered emissions block ~<= 8 MiB."""
    lt_cap = max(1, (4 * 1024 * 1024) // (Bt * T * 4))
    Lt = min(L, lt_cap)
    while L % Lt != 0:                   # require an exact divisor so no L-padding copy
        Lt -= 1
    return Lt, L // Lt


def crf_log_likelihood(emissions, tags, mask, start, end, trans, reduction="mean"):
    """emissions: (L, B, T) f32 time-major (batch_first=False); tags/mask: (L, B)."""
    if reduction not in ("none", "sum", "mean", "token_mean"):
        raise ValueError(f"invalid reduction: {reduction}")
    L, B, T = emissions.shape
    maskf = mask.astype(jnp.float32)

    # Emissions keep their natural (L, B, T) layout — no transpose / padding HBM pass.
    em = emissions.astype(jnp.float32)                               # (L, B, T)
    tg = tags.astype(jnp.int32).reshape(L, 1, B)                     # (L, 1, B) free reshape
    mk = maskf.reshape(L, 1, B)                                      # (L, 1, B)

    Bt, nb = _pick_batch_tile(B)
    Lt, nl = _pick_time_tile(L, Bt, T)

    start_c = start.reshape(T, 1).astype(jnp.float32)
    end_c = end.reshape(T, 1).astype(jnp.float32)
    trans_f = trans.astype(jnp.float32)
    trans_t = trans_f.T                                              # (T_dst, T_src) MXU gather LHS
    # Hoisted once (parameter-sized): exp(transitions) with the per-destination max factored
    # out so the in-kernel log-matmul-exp recursion is exact and overflow-free.
    tmax = jnp.max(trans_f, axis=0, keepdims=True)                   # (1, T_dst)
    exp_trans_t = jnp.exp(trans_f - tmax).T                          # (T_dst, T_src)
    tmax_col = tmax.T                                                # (T_dst, 1)
    eye = jnp.eye(T, dtype=jnp.float32)                              # exact identity for MXU transpose

    llh2d = pl.pallas_call(
        _crf_llh_kernel,
        out_shape=jax.ShapeDtypeStruct((1, B), jnp.float32),
        grid_spec=pltpu.PrefetchScalarGridSpec(
            num_scalar_prefetch=0,
            grid=(nb, nl),                                           # (batch tiles, time blocks)
            in_specs=[
                pl.BlockSpec((Lt, Bt, T), lambda b, l: (l, b, 0)),   # emissions slab
                pl.BlockSpec((Lt, 1, Bt), lambda b, l: (l, 0, b)),   # tags slab
                pl.BlockSpec((Lt, 1, Bt), lambda b, l: (l, 0, b)),   # mask slab
                pl.BlockSpec((T, 1), lambda b, l: (0, 0)),           # start_transitions
                pl.BlockSpec((T, 1), lambda b, l: (0, 0)),           # end_transitions
                pl.BlockSpec((T, T), lambda b, l: (0, 0)),           # transitions.T
                pl.BlockSpec((T, T), lambda b, l: (0, 0)),           # exp(transitions - tmax).T
                pl.BlockSpec((T, 1), lambda b, l: (0, 0)),           # tmax per destination tag
                pl.BlockSpec((T, T), lambda b, l: (0, 0)),           # identity (MXU transpose LHS)
            ],
            out_specs=pl.BlockSpec((1, Bt), lambda b, l: (0, b)),    # lane-dense llh row
            scratch_shapes=[
                pltpu.VMEM((T, Bt), jnp.float32),   # alpha (forward log-scores)
                pltpu.VMEM((1, Bt), jnp.float32),   # numerator path score
                pltpu.VMEM((1, Bt), jnp.int32),     # previous-step tags
                pltpu.VMEM((1, Bt), jnp.int32),     # last in-sequence tags
            ],
        ),
        compiler_params=pltpu.CompilerParams(
            dimension_semantics=("parallel", "arbitrary"),
            vmem_limit_bytes=32 * 1024 * 1024),
    )(em, tg, mk, start_c, end_c, trans_t, exp_trans_t, tmax_col, eye)

    llh = llh2d[0]                                                    # (B,)
    if reduction == "none":
        return llh
    if reduction == "sum":
        return llh.sum()
    if reduction == "mean":
        return llh.mean()
    return llh.sum() / maskf.sum()                                    # token_mean


# -------- pure-JAX reference (mirrors the PyTorch module) for validation --------
def crf_ref(emissions, tags, mask, start, end, trans):
    L, B, T = emissions.shape
    maskf = mask.astype(jnp.float32)
    score = start[tags[0]] + emissions[0, jnp.arange(B), tags[0]]
    for i in range(1, L):
        score = score + trans[tags[i - 1], tags[i]] * maskf[i]
        score = score + emissions[i, jnp.arange(B), tags[i]] * maskf[i]
    seq_ends = mask.astype(jnp.int32).sum(0) - 1
    last_tags = tags[seq_ends, jnp.arange(B)]
    score = score + end[last_tags]

    alpha = start + emissions[0]
    for i in range(1, L):
        nxt = alpha[:, :, None] + trans[None] + emissions[i][:, None, :]
        nxt = jax.scipy.special.logsumexp(nxt, axis=1)
        alpha = jnp.where(maskf[i][:, None] > 0, nxt, alpha)
    denom = jax.scipy.special.logsumexp(alpha + end, axis=1)
    return score - denom


if __name__ == "__main__":
    L, B, T = 8, 64, 16   # seq_length, batch_size (module's batch_size scale), num_tags

    key = jax.random.PRNGKey(0)
    k_em, k_tags, k_len, k_s, k_e, k_t = jax.random.split(key, 6)

    # Parameters: uniform(-0.1, 0.1) like the module's reset_parameters().
    start_transitions = jax.random.uniform(k_s, (T,), minval=-0.1, maxval=0.1)
    end_transitions = jax.random.uniform(k_e, (T,), minval=-0.1, maxval=0.1)
    transitions = jax.random.uniform(k_t, (T, T), minval=-0.1, maxval=0.1)

    emissions = jax.random.normal(k_em, (L, B, T), dtype=jnp.float32)
    tags = jax.random.randint(k_tags, (L, B), 0, T, dtype=jnp.int32)

    # Contiguous mask with first timestep all-on (as the torchcrf contract requires).
    lengths = jax.random.randint(k_len, (B,), 1, L + 1)
    mask = (jnp.arange(L)[:, None] < lengths[None, :]).astype(jnp.uint8)   # (L, B)

    llh_none = crf_log_likelihood(emissions, tags, mask, start_transitions,
                                  end_transitions, transitions, reduction="none")
    llh_mean = crf_log_likelihood(emissions, tags, mask, start_transitions,
                                  end_transitions, transitions, reduction="mean")
    jax.block_until_ready((llh_none, llh_mean))

    ref = crf_ref(emissions, tags, mask, start_transitions, end_transitions, transitions)
    assert jnp.allclose(llh_none, ref, atol=2e-4, rtol=2e-4), (llh_none, ref)
    assert jnp.allclose(llh_mean, ref.mean(), atol=2e-4, rtol=2e-4)

    print("KERNEL_OK")
</pallas_src>

<mosaic_0001>
module attributes {stable_mosaic.version = 11 : i64} {
  func.func @_crf_llh_kernel(%arg0: i32, %arg1: i32, %arg2: memref<8x64x16xf32, #tpu.memory_space<vmem>>, %arg3: memref<8x1x64xi32, #tpu.memory_space<vmem>>, %arg4: memref<8x1x64xf32, #tpu.memory_space<vmem>>, %arg5: memref<16x1xf32, #tpu.memory_space<vmem>>, %arg6: memref<16x1xf32, #tpu.memory_space<vmem>>, %arg7: memref<16x16xf32, #tpu.memory_space<vmem>>, %arg8: memref<16x16xf32, #tpu.memory_space<vmem>>, %arg9: memref<16x1xf32, #tpu.memory_space<vmem>>, %arg10: memref<16x16xf32, #tpu.memory_space<vmem>>, %arg11: memref<1x64xf32, #tpu.memory_space<vmem>>, %arg12: memref<16x64xf32, #tpu.memory_space<vmem>>, %arg13: memref<1x64xf32, #tpu.memory_space<vmem>>, %arg14: memref<1x64xi32, #tpu.memory_space<vmem>>, %arg15: memref<1x64xi32, #tpu.memory_space<vmem>>) attributes {dimension_semantics = [#tpu.dimension_semantics<parallel>, #tpu.dimension_semantics<arbitrary>], iteration_bounds = array<i64: 1, 1>, scalar_prefetch = 0 : i64, scratch_operands = 4 : i64, tpu.core_type = #tpu.core_type<tc>, window_params = [{transform_indices = @transform_0, window_bounds = array<i64: 8, 64, 16>}, {transform_indices = @transform_1, window_bounds = array<i64: 8, 1, 64>}, {transform_indices = @transform_2, window_bounds = array<i64: 8, 1, 64>}, {pipeline_mode = #tpu.pipeline_mode<synchronous>, transform_indices = @transform_3, window_bounds = array<i64: 16, 1>}, {pipeline_mode = #tpu.pipeline_mode<synchronous>, transform_indices = @transform_4, window_bounds = array<i64: 16, 1>}, {pipeline_mode = #tpu.pipeline_mode<synchronous>, transform_indices = @transform_5, window_bounds = array<i64: 16, 16>}, {pipeline_mode = #tpu.pipeline_mode<synchronous>, transform_indices = @transform_6, window_bounds = array<i64: 16, 16>}, {pipeline_mode = #tpu.pipeline_mode<synchronous>, transform_indices = @transform_7, window_bounds = array<i64: 16, 1>}, {pipeline_mode = #tpu.pipeline_mode<synchronous>, transform_indices = @transform_8, window_bounds = array<i64: 16, 16>}, {transform_indices = @transform_9, window_bounds = array<i64: 1, 64>}]} {
    %c0 = arith.constant 0 : index
    %c0_0 = arith.constant 0 : index
    %0 = vector.load %arg10[%c0, %c0_0] : memref<16x16xf32, #tpu.memory_space<vmem>>, vector<16x16xf32>
    %1 = tpu.iota {dimensions = array<i32: 0>} : vector<16x64xi32>
    %c0_1 = arith.constant 0 : index
    %c0_2 = arith.constant 0 : index
    %2 = vector.load %arg5[%c0_1, %c0_2] : memref<16x1xf32, #tpu.memory_space<vmem>>, vector<16x1xf32>
    %c0_3 = arith.constant 0 : index
    %c0_4 = arith.constant 0 : index
    %3 = vector.load %arg6[%c0_3, %c0_4] : memref<16x1xf32, #tpu.memory_space<vmem>>, vector<16x1xf32>
    %c0_5 = arith.constant 0 : index
    %c0_6 = arith.constant 0 : index
    %4 = vector.load %arg7[%c0_5, %c0_6] : memref<16x16xf32, #tpu.memory_space<vmem>>, vector<16x16xf32>
    %c0_7 = arith.constant 0 : index
    %c0_8 = arith.constant 0 : index
    %5 = vector.load %arg8[%c0_7, %c0_8] : memref<16x16xf32, #tpu.memory_space<vmem>>, vector<16x16xf32>
    %c0_9 = arith.constant 0 : index
    %c0_10 = arith.constant 0 : index
    %6 = vector.load %arg9[%c0_9, %c0_10] : memref<16x1xf32, #tpu.memory_space<vmem>>, vector<16x1xf32>
    %c0_i32 = arith.constant 0 : i32
    %7 = arith.cmpi eq, %arg1, %c0_i32 : i32
    %8 = arith.extui %7 : i1 to i32
    %c0_i32_11 = arith.constant 0 : i32
    %9 = arith.cmpi ne, %8, %c0_i32_11 : i32
    scf.if %9 {
      %c0_32 = arith.constant 0 : index
      %c0_33 = arith.constant 0 : index
      %c0_34 = arith.constant 0 : index
      %23 = vector.load %arg2[%c0_32, %c0_33, %c0_34] : memref<8x64x16xf32, #tpu.memory_space<vmem>>, vector<1x64x16xf32>
      %24 = vector.shape_cast %23 : vector<1x64x16xf32> to vector<64x16xf32>
      %cst_35 = arith.constant dense<0.000000e+00> : vector<16x64xf32>
      %25 = tpu.matmul %0, %24, %cst_35 {dimension_numbers = #tpu.dot_dimension_numbers<[1], [1], [0], [0], [0, 0, 1, 0], [], []>, precision = #tpu.contract_precision<fp32>} : vector<16x16xf32>, vector<64x16xf32>, vector<16x64xf32> -> vector<16x64xf32>
      %c0_36 = arith.constant 0 : index
      %c0_37 = arith.constant 0 : index
      %c0_38 = arith.constant 0 : index
      %26 = vector.load %arg3[%c0_36, %c0_37, %c0_38] : memref<8x1x64xi32, #tpu.memory_space<vmem>>, vector<1x1x64xi32>
      %27 = vector.shape_cast %26 : vector<1x1x64xi32> to vector<1x64xi32>
      %28 = vector.broadcast %2 : vector<16x1xf32> to vector<16x64xf32>
      %29 = arith.addf %28, %25 : vector<16x64xf32>
      %c0_39 = arith.constant 0 : index
      %c0_40 = arith.constant 0 : index
      %30 = vector.load %arg12[%c0_39, %c0_40] : memref<16x64xf32, #tpu.memory_space<vmem>>, vector<16x64xf32>
      tpu.vector_store %arg12[%c0_39, %c0_40], %29 {strides = array<i32>} : memref<16x64xf32, #tpu.memory_space<vmem>>, vector<16x64xf32>,
      %31 = vector.broadcast %27 : vector<1x64xi32> to vector<16x64xi32>
      %32 = arith.cmpi eq, %31, %1 : vector<16x64xi32>
      %33 = arith.extui %32 : vector<16x64xi1> to vector<16x64xi32>
      %34 = arith.sitofp %33 : vector<16x64xi32> to vector<16x64xf32>
      %35 = arith.mulf %34, %29 : vector<16x64xf32>
      %cst_41 = arith.constant dense<0.000000e+00> : vector<64xf32>
      %36 = vector.multi_reduction <add>, %35, %cst_41 [0] : vector<16x64xf32> to vector<64xf32>
      %37 = vector.shape_cast %36 : vector<64xf32> to vector<1x64xf32>
      %c0_42 = arith.constant 0 : index
      %c0_43 = arith.constant 0 : index
      %38 = vector.load %arg13[%c0_42, %c0_43] : memref<1x64xf32, #tpu.memory_space<vmem>>, vector<1x64xf32>
      tpu.vector_store %arg13[%c0_42, %c0_43], %37 {strides = array<i32>} : memref<1x64xf32, #tpu.memory_space<vmem>>, vector<1x64xf32>,
      %c0_44 = arith.constant 0 : index
      %c0_45 = arith.constant 0 : index
      %39 = vector.load %arg14[%c0_44, %c0_45] : memref<1x64xi32, #tpu.memory_space<vmem>>, vector<1x64xi32>
      tpu.vector_store %arg14[%c0_44, %c0_45], %27 {strides = array<i32>} : memref<1x64xi32, #tpu.memory_space<vmem>>, vector<1x64xi32>,
      %c0_46 = arith.constant 0 : index
      %c0_47 = arith.constant 0 : index
      %40 = vector.load %arg15[%c0_46, %c0_47] : memref<1x64xi32, #tpu.memory_space<vmem>>, vector<1x64xi32>
      tpu.vector_store %arg15[%c0_46, %c0_47], %27 {strides = array<i32>} : memref<1x64xi32, #tpu.memory_space<vmem>>, vector<1x64xi32>,
    } else {
    }
    %c0_12 = arith.constant 0 : index
    %c0_13 = arith.constant 0 : index
    %10 = vector.load %arg12[%c0_12, %c0_13] : memref<16x64xf32, #tpu.memory_space<vmem>>, vector<16x64xf32>
    %c0_14 = arith.constant 0 : index
    %c0_15 = arith.constant 0 : index
    %11 = vector.load %arg13[%c0_14, %c0_15] : memref<1x64xf32, #tpu.memory_space<vmem>>, vector<1x64xf32>
    %c0_16 = arith.constant 0 : index
    %c0_17 = arith.constant 0 : index
    %12 = vector.load %arg14[%c0_16, %c0_17] : memref<1x64xi32, #tpu.memory_space<vmem>>, vector<1x64xi32>
    %c0_18 = arith.constant 0 : index
    %c0_19 = arith.constant 0 : index
    %13 = vector.load %arg15[%c0_18, %c0_19] : memref<1x64xi32, #tpu.memory_space<vmem>>, vector<1x64xi32>
    %cst = arith.constant 1.17549435E-38 : f32
    %c0_i32_20 = arith.constant 0 : i32
    %c8_i32 = arith.constant 8 : i32
    %14 = arith.addi %c0_i32_20, %c8_i32 : i32
    %c1_i32 = arith.constant 1 : i32
    %15:4 = scf.for %arg16 = %c0_i32_20 to %14 step %c1_i32 iter_args(%arg17 = %10, %arg18 = %11, %arg19 = %12, %arg20 = %13) -> (vector<16x64xf32>, vector<1x64xf32>, vector<1x64xi32>, vector<1x64xi32>)  : i32 {
      %c0_i32_32 = arith.constant 0 : i32
      %23 = arith.cmpi eq, %arg1, %c0_i32_32 : i32
      %c0_i32_33 = arith.constant 0 : i32
      %24 = arith.cmpi eq, %arg16, %c0_i32_33 : i32
      %25 = arith.andi %23, %24 : i1
      %26 = arith.index_cast %arg16 : i32 to index
      %c0_34 = arith.constant 0 : index
      %c0_35 = arith.constant 0 : index
      %27 = vector.load %arg4[%26, %c0_34, %c0_35] : memref<8x1x64xf32, #tpu.memory_space<vmem>>, vector<1x1x64xf32>
      %28 = vector.shape_cast %27 : vector<1x1x64xf32> to vector<1x64xf32>
      %cst_36 = arith.constant 0.000000e+00 : f32
      %29 = vector.broadcast %cst_36 : f32 to vector<1x64xf32>
      %30 = arith.select %25, %29, %28 : vector<1x64xf32>
      %31 = arith.index_cast %arg16 : i32 to index
      %c0_37 = arith.constant 0 : index
      %c0_38 = arith.constant 0 : index
      %32 = vector.load %arg2[%31, %c0_37, %c0_38] : memref<8x64x16xf32, #tpu.memory_space<vmem>>, vector<1x64x16xf32>
      %33 = vector.shape_cast %32 : vector<1x64x16xf32> to vector<64x16xf32>
      %cst_39 = arith.constant dense<0.000000e+00> : vector<16x64xf32>
      %34 = tpu.matmul %0, %33, %cst_39 {dimension_numbers = #tpu.dot_dimension_numbers<[1], [1], [0], [0], [0, 0, 1, 0], [], []>, precision = #tpu.contract_precision<fp32>} : vector<16x16xf32>, vector<64x16xf32>, vector<16x64xf32> -> vector<16x64xf32>
      %35 = arith.index_cast %arg16 : i32 to index
      %c0_40 = arith.constant 0 : index
      %c0_41 = arith.constant 0 : index
      %36 = vector.load %arg3[%35, %c0_40, %c0_41] : memref<8x1x64xi32, #tpu.memory_space<vmem>>, vector<1x1x64xi32>
      %37 = vector.shape_cast %36 : vector<1x1x64xi32> to vector<1x64xi32>
      %38 = vector.broadcast %37 : vector<1x64xi32> to vector<16x64xi32>
      %39 = arith.cmpi eq, %38, %1 : vector<16x64xi32>
      %40 = arith.extui %39 : vector<16x64xi1> to vector<16x64xi32>
      %41 = arith.sitofp %40 : vector<16x64xi32> to vector<16x64xf32>
      %42 = vector.broadcast %arg19 : vector<1x64xi32> to vector<16x64xi32>
      %43 = arith.cmpi eq, %42, %1 : vector<16x64xi32>
      %44 = arith.extui %43 : vector<16x64xi1> to vector<16x64xi32>
      %45 = arith.sitofp %44 : vector<16x64xi32> to vector<16x64xf32>
      %cst_42 = arith.constant dense<0.000000e+00> : vector<16x64xf32>
      %46 = tpu.matmul %4, %45, %cst_42 {dimension_numbers = #tpu.dot_dimension_numbers<[1], [0], [0], [1], [0, 0, 1, 1], [], []>, precision = #tpu.contract_precision<fp32>} : vector<16x16xf32>, vector<16x64xf32>, vector<16x64xf32> -> vector<16x64xf32>
      %47 = arith.mulf %46, %41 : vector<16x64xf32>
      %cst_43 = arith.constant dense<0.000000e+00> : vector<64xf32>
      %48 = vector.multi_reduction <add>, %47, %cst_43 [0] : vector<16x64xf32> to vector<64xf32>
      %49 = vector.shape_cast %48 : vector<64xf32> to vector<1x64xf32>
      %50 = arith.mulf %34, %41 : vector<16x64xf32>
      %cst_44 = arith.constant dense<0.000000e+00> : vector<64xf32>
      %51 = vector.multi_reduction <add>, %50, %cst_44 [0] : vector<16x64xf32> to vector<64xf32>
      %52 = vector.shape_cast %51 : vector<64xf32> to vector<1x64xf32>
      %53 = arith.addf %49, %52 : vector<1x64xf32>
      %54 = arith.mulf %53, %30 : vector<1x64xf32>
      %55 = arith.addf %arg18, %54 : vector<1x64xf32>
      %cst_45 = arith.constant 0.000000e+00 : f32
      %56 = vector.broadcast %cst_45 : f32 to vector<1x64xf32>
      %57 = arith.cmpf ogt, %30, %56 : vector<1x64xf32>
      %58 = arith.select %57, %37, %arg20 : vector<1x64xi1>, vector<1x64xi32>
      %cst_46 = arith.constant dense<0xFF800000> : vector<64xf32>
      %59 = vector.multi_reduction <maximumf>, %arg17, %cst_46 [0] : vector<16x64xf32> to vector<64xf32>
      %60 = vector.shape_cast %59 : vector<64xf32> to vector<1x64xf32>
      %61 = vector.broadcast %60 : vector<1x64xf32> to vector<16x64xf32>
      %62 = arith.subf %arg17, %61 : vector<16x64xf32>
      %63 = math.exp %62 : vector<16x64xf32>
      %cst_47 = arith.constant dense<0.000000e+00> : vector<16x64xf32>
      %64 = tpu.matmul %5, %63, %cst_47 {dimension_numbers = #tpu.dot_dimension_numbers<[1], [0], [0], [1], [0, 0, 1, 1], [], []>, precision = #tpu.contract_precision<fp32>} : vector<16x16xf32>, vector<16x64xf32>, vector<16x64xf32> -> vector<16x64xf32>
      %65 = vector.broadcast %60 : vector<1x64xf32> to vector<16x64xf32>
      %66 = vector.broadcast %6 : vector<16x1xf32> to vector<16x64xf32>
      %67 = arith.addf %65, %66 : vector<16x64xf32>
      %68 = vector.broadcast %cst : f32 to vector<16x64xf32>
      %69 = arith.maximumf %64, %68 : vector<16x64xf32>
      %70 = math.log %69 : vector<16x64xf32>
      %71 = arith.addf %67, %70 : vector<16x64xf32>
      %72 = arith.addf %71, %34 : vector<16x64xf32>
      %cst_48 = arith.constant 0.000000e+00 : f32
      %73 = vector.broadcast %cst_48 : f32 to vector<1x64xf32>
      %74 = arith.cmpf ogt, %30, %73 : vector<1x64xf32>
      %75 = vector.shape_cast %74 : vector<1x64xi1> to vector<1x64xi1>
      %76 = vector.broadcast %75 : vector<1x64xi1> to vector<16x64xi1>
      %77 = arith.select %76, %72, %arg17 : vector<16x64xi1>, vector<16x64xf32>
      scf.yield %77, %55, %37, %58 : vector<16x64xf32>, vector<1x64xf32>, vector<1x64xi32>, vector<1x64xi32>
    }
    %c8_i32_21 = arith.constant 8 : i32
    %c0_22 = arith.constant 0 : index
    %c0_23 = arith.constant 0 : index
    %16 = vector.load %arg12[%c0_22, %c0_23] : memref<16x64xf32, #tpu.memory_space<vmem>>, vector<16x64xf32>
    tpu.vector_store %arg12[%c0_22, %c0_23], %15#0 {strides = array<i32>} : memref<16x64xf32, #tpu.memory_space<vmem>>, vector<16x64xf32>,
    %c0_24 = arith.constant 0 : index
    %c0_25 = arith.constant 0 : index
    %17 = vector.load %arg13[%c0_24, %c0_25] : memref<1x64xf32, #tpu.memory_space<vmem>>, vector<1x64xf32>
    tpu.vector_store %arg13[%c0_24, %c0_25], %15#1 {strides = array<i32>} : memref<1x64xf32, #tpu.memory_space<vmem>>, vector<1x64xf32>,
    %c0_26 = arith.constant 0 : index
    %c0_27 = arith.constant 0 : index
    %18 = vector.load %arg14[%c0_26, %c0_27] : memref<1x64xi32, #tpu.memory_space<vmem>>, vector<1x64xi32>
    tpu.vector_store %arg14[%c0_26, %c0_27], %15#2 {strides = array<i32>} : memref<1x64xi32, #tpu.memory_space<vmem>>, vector<1x64xi32>,
    %c0_28 = arith.constant 0 : index
    %c0_29 = arith.constant 0 : index
    %19 = vector.load %arg15[%c0_28, %c0_29] : memref<1x64xi32, #tpu.memory_space<vmem>>, vector<1x64xi32>
    tpu.vector_store %arg15[%c0_28, %c0_29], %15#3 {strides = array<i32>} : memref<1x64xi32, #tpu.memory_space<vmem>>, vector<1x64xi32>,
    %c0_i32_30 = arith.constant 0 : i32
    %20 = arith.cmpi eq, %arg1, %c0_i32_30 : i32
    %21 = arith.extui %20 : i1 to i32
    %c0_i32_31 = arith.constant 0 : i32
    %22 = arith.cmpi ne, %21, %c0_i32_31 : i32
    scf.if %22 {
      %23 = vector.broadcast %3 : vector<16x1xf32> to vector<16x64xf32>
      %24 = arith.addf %15#0, %23 : vector<16x64xf32>
      %cst_32 = arith.constant dense<0xFF800000> : vector<64xf32>
      %25 = vector.multi_reduction <maximumf>, %24, %cst_32 [0] : vector<16x64xf32> to vector<64xf32>
      %26 = vector.shape_cast %25 : vector<64xf32> to vector<1x64xf32>
      %27 = vector.broadcast %26 : vector<1x64xf32> to vector<16x64xf32>
      %28 = arith.subf %24, %27 : vector<16x64xf32>
      %29 = math.exp %28 : vector<16x64xf32>
      %cst_33 = arith.constant dense<0.000000e+00> : vector<64xf32>
      %30 = vector.multi_reduction <add>, %29, %cst_33 [0] : vector<16x64xf32> to vector<64xf32>
      %31 = vector.shape_cast %30 : vector<64xf32> to vector<1x64xf32>
      %32 = math.log %31 : vector<1x64xf32>
      %33 = arith.addf %26, %32 : vector<1x64xf32>
      %34 = vector.broadcast %15#3 : vector<1x64xi32> to vector<16x64xi32>
      %35 = arith.cmpi eq, %34, %1 : vector<16x64xi32>
      %36 = arith.extui %35 : vector<16x64xi1> to vector<16x64xi32>
      %37 = arith.sitofp %36 : vector<16x64xi32> to vector<16x64xf32>
      %38 = vector.broadcast %3 : vector<16x1xf32> to vector<16x64xf32>
      %39 = arith.mulf %37, %38 : vector<16x64xf32>
      %cst_34 = arith.constant dense<0.000000e+00> : vector<64xf32>
      %40 = vector.multi_reduction <add>, %39, %cst_34 [0] : vector<16x64xf32> to vector<64xf32>
      %41 = vector.shape_cast %40 : vector<64xf32> to vector<1x64xf32>
      %42 = arith.addf %15#1, %41 : vector<1x64xf32>
      %43 = arith.subf %42, %33 : vector<1x64xf32>
      %c0_35 = arith.constant 0 : index
      %c0_36 = arith.constant 0 : index
      %44 = vector.load %arg11[%c0_35, %c0_36] : memref<1x64xf32, #tpu.memory_space<vmem>>, vector<1x64xf32>
      tpu.vector_store %arg11[%c0_35, %c0_36], %43 {strides = array<i32>} : memref<1x64xf32, #tpu.memory_space<vmem>>, vector<1x64xf32>,
    } else {
    }
    return
  }
  func.func @transform_0(%arg0: i32, %arg1: i32) -> (i32, i32, i32) {
    %c0_i32 = arith.constant 0 : i32
    %c0_i32_0 = arith.constant 0 : i32
    return %arg1, %arg0, %c0_i32 : i32, i32, i32
  }
  func.func @transform_1(%arg0: i32, %arg1: i32) -> (i32, i32, i32) {
    %c0_i32 = arith.constant 0 : i32
    %c0_i32_0 = arith.constant 0 : i32
    return %arg1, %c0_i32, %arg0 : i32, i32, i32
  }
  func.func @transform_2(%arg0: i32, %arg1: i32) -> (i32, i32, i32) {
    %c0_i32 = arith.constant 0 : i32
    %c0_i32_0 = arith.constant 0 : i32
    return %arg1, %c0_i32, %arg0 : i32, i32, i32
  }
  func.func @transform_3(%arg0: i32, %arg1: i32) -> (i32, i32) {
    %c0_i32 = arith.constant 0 : i32
    %c0_i32_0 = arith.constant 0 : i32
    %c0_i32_1 = arith.constant 0 : i32
    return %c0_i32, %c0_i32_0 : i32, i32
  }
  func.func @transform_4(%arg0: i32, %arg1: i32) -> (i32, i32) {
    %c0_i32 = arith.constant 0 : i32
    %c0_i32_0 = arith.constant 0 : i32
    %c0_i32_1 = arith.constant 0 : i32
    return %c0_i32, %c0_i32_0 : i32, i32
  }
  func.func @transform_5(%arg0: i32, %arg1: i32) -> (i32, i32) {
    %c0_i32 = arith.constant 0 : i32
    %c0_i32_0 = arith.constant 0 : i32
    %c0_i32_1 = arith.constant 0 : i32
    return %c0_i32, %c0_i32_0 : i32, i32
  }
  func.func @transform_6(%arg0: i32, %arg1: i32) -> (i32, i32) {
    %c0_i32 = arith.constant 0 : i32
    %c0_i32_0 = arith.constant 0 : i32
    %c0_i32_1 = arith.constant 0 : i32
    return %c0_i32, %c0_i32_0 : i32, i32
  }
  func.func @transform_7(%arg0: i32, %arg1: i32) -> (i32, i32) {
    %c0_i32 = arith.constant 0 : i32
    %c0_i32_0 = arith.constant 0 : i32
    %c0_i32_1 = arith.constant 0 : i32
    return %c0_i32, %c0_i32_0 : i32, i32
  }
  func.func @transform_8(%arg0: i32, %arg1: i32) -> (i32, i32) {
    %c0_i32 = arith.constant 0 : i32
    %c0_i32_0 = arith.constant 0 : i32
    %c0_i32_1 = arith.constant 0 : i32
    return %c0_i32, %c0_i32_0 : i32, i32
  }
  func.func @transform_9(%arg0: i32, %arg1: i32) -> (i32, i32) {
    %c0_i32 = arith.constant 0 : i32
    %c0_i32_0 = arith.constant 0 : i32
    return %c0_i32, %arg0 : i32, i32
  }
}

</mosaic_0001>

<llo_original>
// kernel: tpu_custom_call.1
$region0: #{tpu_custom_call.1}
  #allocation0 [shape = 'u32[]', space=smem, size = 0x4, offset = 0x4, fixed_abs, tag = 'smem constant byte address 0x4 - core index']
  #allocation1 [shape = 'u32[144,128]{1,0:T(1,128)}', space=vmem, size = 0x12000, scoped, tag = 'internal scratch']
  #allocation2 [shape = 'f32[16,64]{1,0:T(8,128)}', space=vmem, size = 0x2000, scoped, tag = 'scratch operand']
  #allocation3 [shape = 'f32[1,64]{1,0:T(1,128)}', space=vmem, size = 0x200, scoped, tag = 'scratch operand']
  #allocation4 [shape = 's32[1,64]{1,0:T(1,128)}', space=vmem, size = 0x200, scoped, tag = 'scratch operand']
  #allocation5 [shape = 's32[1,64]{1,0:T(1,128)}', space=vmem, size = 0x200, scoped, tag = 'scratch operand']
  %s0 = inlined_call_operand.vmem [shape: f32[8,64,16], index: 0, kind: input, shape index: {}]
  %s1 = inlined_call_operand.vmem [shape: s32[8,1,64], index: 1, kind: input, shape index: {}]
  %s2 = inlined_call_operand.vmem [shape: f32[8,1,64], index: 2, kind: input, shape index: {}]
  %s3 = inlined_call_operand.vmem [shape: f32[16,1], index: 3, kind: input, shape index: {}]
  %s4 = inlined_call_operand.vmem [shape: f32[16,1], index: 4, kind: input, shape index: {}]
  %s5 = inlined_call_operand.vmem [shape: f32[16,16], index: 5, kind: input, shape index: {}]
  %s6 = inlined_call_operand.vmem [shape: f32[16,16], index: 6, kind: input, shape index: {}]
  %s7 = inlined_call_operand.vmem [shape: f32[16,1], index: 7, kind: input, shape index: {}]
  %s8 = inlined_call_operand.vmem [shape: f32[16,16], index: 8, kind: input, shape index: {}]
  %s9 = inlined_call_operand.hbm [shape: f32[1,64], index: 9, kind: output, shape index: {}]
  %s10 = sld [smem:[#allocation0]]
  $region61: #{tpu_custom_call.1} parent=0
    _
  %s12 = ssub.s32 1, %s10
  %s13 = scalar_select 0, %s12, %s10
  $region1: #{tpu_custom_call.1} parent=0
    #allocation6 [shape = 'u8[512]{0}', space=vmem, size = 0x400, scoped, tag = 'output window, operand 0, single buffered']
    #allocation7 [shape = 's32[1]{0}', space=sflag, size = 0x4, scoped, tag = 'scoped memory for tpu_custom_call.1']
    %14 = vsyncpa [#allocation7], 0
    // Predicated region
    $region2: #{tpu_custom_call.1} parent=1 // pred_check
      _
    $region3: #{tpu_custom_call.1} parent=1 // pred_check_branch
      %16 = sbr.rel (0) target = $region5
    $region4: #{tpu_custom_call.1} parent=1 // pred_region
      _
    $region5: #{tpu_custom_call.1} parent=1 // pred_fallthru
      _
    // Predicated region
    $region6: #{tpu_custom_call.1} parent=1 // pred_check
      _
    $region7: #{tpu_custom_call.1} parent=1 // pred_check_branch
      %18 = sbr.rel (0) target = $region9
    $region8: #{tpu_custom_call.1} parent=1 // pred_region
      _
    $region9: #{tpu_custom_call.1} parent=1 // pred_fallthru
      _
    // Predicated region
    $region10: #{tpu_custom_call.1} parent=1 // pred_check
      _
    $region11: #{tpu_custom_call.1} parent=1 // pred_check_branch
      %20 = sbr.rel (0) target = $region13
    $region12: #{tpu_custom_call.1} parent=1 // pred_region
      _
    $region13: #{tpu_custom_call.1} parent=1 // pred_fallthru
      _
    // Predicated region
    $region14: #{tpu_custom_call.1} parent=1 // pred_check
      _
    $region15: #{tpu_custom_call.1} parent=1 // pred_check_branch
      %22 = sbr.rel (0) target = $region17
    $region16: #{tpu_custom_call.1} parent=1 // pred_region
      _
    $region17: #{tpu_custom_call.1} parent=1 // pred_fallthru
      _
    // Predicated region
    $region18: #{tpu_custom_call.1} parent=1 // pred_check
      _
    $region19: #{tpu_custom_call.1} parent=1 // pred_check_branch
      %24 = sbr.rel (0) target = $region21
    $region20: #{tpu_custom_call.1} parent=1 // pred_region
      _
    $region21: #{tpu_custom_call.1} parent=1 // pred_fallthru
      _
    // Predicated region
    $region22: #{tpu_custom_call.1} parent=1 // pred_check
      _
    $region23: #{tpu_custom_call.1} parent=1 // pred_check_branch
      %26 = sbr.rel (0) target = $region25
    $region24: #{tpu_custom_call.1} parent=1 // pred_region
      _
    $region25: #{tpu_custom_call.1} parent=1 // pred_fallthru
      _
    // Predicated region
    $region26: #{tpu_custom_call.1} parent=1 // pred_check
      _
    $region27: #{tpu_custom_call.1} parent=1 // pred_check_branch
      %28 = sbr.rel (0) target = $region29
    $region28: #{tpu_custom_call.1} parent=1 // pred_region
      _
    $region29: #{tpu_custom_call.1} parent=1 // pred_fallthru
      _
    // Predicated region
    $region30: #{tpu_custom_call.1} parent=1 // pred_check
      _
    $region31: #{tpu_custom_call.1} parent=1 // pred_check_branch
      %30 = sbr.rel (0) target = $region33
    $region32: #{tpu_custom_call.1} parent=1 // pred_region
      _
    $region33: #{tpu_custom_call.1} parent=1 // pred_fallthru
      _
    // Predicated region
    $region34: #{tpu_custom_call.1} parent=1 // pred_check
      _
    $region35: #{tpu_custom_call.1} parent=1 // pred_check_branch
      %32 = sbr.rel (0) target = $region37
    $region36: #{tpu_custom_call.1} parent=1 // pred_region
      _
    $region37: #{tpu_custom_call.1} parent=1 // pred_fallthru
      _
    %v33 = vld [vmem:[%s8] sm:$0xff]
    %v34 = vld [vmem:[%s8 + $0x8] sm:$0xff]
    %v35 = vlaneseq
    %v36 = vshrl.u32 %v35, 7
    %v37 = vadd.s32 %v36, 8
    %v38 = vld [vmem:[%s3] sm:$0xff]
    %v39 = vld [vmem:[%s3 + $0x8] sm:$0xff]
    %v40 = vld [vmem:[%s4] sm:$0xff]
    %v41 = vld [vmem:[%s4 + $0x8] sm:$0xff]
    %v42 = vld [vmem:[%s5] sm:$0xff]
    %v43 = vld [vmem:[%s5 + $0x8] sm:$0xff]
    %v44 = vld [vmem:[%s6] sm:$0xff]
    %v45 = vld [vmem:[%s6 + $0x8] sm:$0xff]
    %v46 = vld [vmem:[%s7] sm:$0xff]
    %v47 = vld [vmem:[%s7 + $0x8] sm:$0xff]
    %p48 = scmp.eq.s32.totalorder 0, 0
    // Predicated region
    $region38: #{tpu_custom_call.1} parent=1 // pred_check
      %p49 = pneg %p48
    $region39: #{tpu_custom_call.1} parent=1 // pred_check_branch
      %51 = sbr.rel (%p49) target = $region41
    $region40: #{tpu_custom_call.1} parent=1 // pred_region
      %v52 = vld [vmem:[%s0] sm:$0xff]
      %v53 = vld [vmem:[%s0 + $0x8] sm:$0xff]
      %v54 = vld [vmem:[%s0 + $0x10] sm:$0xff]
      %v55 = vld [vmem:[%s0 + $0x18] sm:$0xff]
      %v56 = vld [vmem:[%s0 + $0x20] sm:$0xff]
      %v57 = vld [vmem:[%s0 + $0x28] sm:$0xff]
      %v58 = vld [vmem:[%s0 + $0x30] sm:$0xff]
      %v59 = vld [vmem:[%s0 + $0x38] sm:$0xff]
      %vm60 = vcmask 130048
      %v62 = vsel %vm60, %v33, 0
      %v65 = vsel %vm60, %v34, 0
      %v68 = vsel %vm60, %v52, 0
      %v71 = vsel %vm60, %v53, 0
      %v74 = vsel %vm60, %v54, 0
      %v77 = vsel %vm60, %v55, 0
      %v80 = vsel %vm60, %v56, 0
      %v83 = vsel %vm60, %v57, 0
      %v86 = vsel %vm60, %v58, 0
      %v89 = vsel %vm60, %v59, 0
      %91 = vmatprep.subr.mxu0 0.0
      %92 = vmatpush1.xpose.msra.mxu0 0.0
      %93 = vmatprep.subr.mxu0 0.0
      %94 = vmatpush1.xpose.msra.mxu0 0.0
      %95 = vmatprep.subr.mxu0 0.0
      %96 = vmatpush1.xpose.msra.mxu0 0.0
      %97 = vmatprep.subr.mxu0 0.0
      %98 = vmatpush1.xpose.msra.mxu0 0.0
      %99 = vmatprep.subr.mxu0 0.0
      %100 = vmatpush1.xpose.msra.mxu0 0.0
      %101 = vmatprep.subr.mxu0 0.0
      %102 = vmatpush1.xpose.msra.mxu0 0.0
      %103 = vmatprep.subr.mxu0 0.0
      %104 = vmatpush1.xpose.msra.mxu0 0.0
      %105 = vmatprep.subr.mxu0 0.0
      %106 = vmatpush1.xpose.msra.mxu0 0.0
      %107 = vmatprep.subr.mxu0 0.0
      %v108 = vand.u32 %v89, 4294901760
      %109 = vmatpush1.xpose.msra.mxu0 %v108
      %110 = vmatprep.subr.mxu0 0.0
      %v111 = vand.u32 %v86, 4294901760
      %112 = vmatpush1.xpose.msra.mxu0 %v111
      %113 = vmatprep.subr.mxu0 0.0
      %v114 = vand.u32 %v83, 4294901760
      %115 = vmatpush1.xpose.msra.mxu0 %v114
      %116 = vmatprep.subr.mxu0 0.0
      %v117 = vand.u32 %v80, 4294901760
      %118 = vmatpush1.xpose.msra.mxu0 %v117
      %119 = vmatprep.subr.mxu0 0.0
      %v120 = vand.u32 %v77, 4294901760
      %121 = vmatpush1.xpose.msra.mxu0 %v120
      %122 = vmatprep.subr.mxu0 0.0
      %v123 = vand.u32 %v74, 4294901760
      %124 = vmatpush1.xpose.msra.mxu0 %v123
      %125 = vmatprep.subr.mxu0 0.0
      %v126 = vand.u32 %v71, 4294901760
      %127 = vmatpush1.xpose.msra.mxu0 %v126
      %128 = vmatprep.subr.mxu0 0.0
      %v129 = vand.u32 %v68, 4294901760
      %130 = vmatpush1.xpose.msra.mxu0 %v129
      %131 = vmatprep.subr.mxu0 0.0
      %132 = vmatpush2.xpose.msra.mxu0 0.0
      %133 = vmatprep.subr.mxu0 0.0
      %134 = vmatpush2.xpose.msra.mxu0 0.0
      %135 = vmatprep.subr.mxu0 0.0
      %136 = vmatpush2.xpose.msra.mxu0 0.0
      %137 = vmatprep.subr.mxu0 0.0
      %138 = vmatpush2.xpose.msra.mxu0 0.0
      %139 = vmatprep.subr.mxu0 0.0
      %140 = vmatpush2.xpose.msra.mxu0 0.0
      %141 = vmatprep.subr.mxu0 0.0
      %142 = vmatpush2.xpose.msra.mxu0 0.0
      %143 = vmatprep.subr.mxu0 0.0
      %144 = vmatpush2.xpose.msra.mxu0 0.0
      %145 = vmatprep.subr.mxu0 0.0
      %146 = vmatpush2.xpose.msra.mxu0 0.0
      %147 = vmatprep.subr.mxu0 0.0
      %148 = vmatpush2.xpose.msra.mxu0 0.0
      %149 = vmatprep.subr.mxu0 0.0
      %150 = vmatpush2.xpose.msra.mxu0 0.0
      %151 = vmatprep.subr.mxu0 0.0
      %152 = vmatpush2.xpose.msra.mxu0 0.0
      %153 = vmatprep.subr.mxu0 0.0
      %154 = vmatpush2.xpose.msra.mxu0 0.0
      %155 = vmatprep.subr.mxu0 0.0
      %156 = vmatpush2.xpose.msra.mxu0 0.0
      %157 = vmatprep.subr.mxu0 0.0
      %158 = vmatpush2.xpose.msra.mxu0 0.0
      %159 = vmatprep.subr.mxu0 0.0
      %160 = vmatpush2.xpose.msra.mxu0 0.0
      %161 = vmatprep.subr.mxu0 0.0
      %162 = vmatpush2.xpose.msra.mxu0 0.0
      %163 = vmatprep.mubr.f32.mxu0 0.0
      %v164 = vand.u32 %v62, 4294901760
      %v165 = vsub.f32 %v62, %v164
      %v166 = vand.u32 %v165, 4294901760
      %v167 = vsub.f32 %v165, %v166
      %v168 = vand.u32 %v167, 4294901760
      %169 = vmatmul.mubr.f32.gmra.mxu0 %v168
      %v170 = vpop.f32.mrf.mxu0
      %v171 = vadd.f32 0.0, %v170
      %v172 = vpop.f32.mrf.mxu0
      %173 = vmatprep.mubr.f32.mxu0 0.0
      %v174 = vand.u32 %v65, 4294901760
      %v175 = vsub.f32 %v65, %v174
      %v176 = vand.u32 %v175, 4294901760
      %v177 = vsub.f32 %v175, %v176
      %v178 = vand.u32 %v177, 4294901760
      %179 = vmatmul.mubr.f32.gmra.mxu0 %v178
      %v180 = vpop.f32.mrf.mxu0
      %v181 = vadd.f32 0.0, %v180
      %v182 = vpop.f32.mrf.mxu0
      %183 = vdwg.mxu0
      %184 = vmatprep.subr.mxu0 0.0
      %185 = vmatpush1.xpose.msra.mxu0 0.0
      %186 = vmatprep.subr.mxu0 0.0
      %187 = vmatpush1.xpose.msra.mxu0 0.0
      %188 = vmatprep.subr.mxu0 0.0
      %189 = vmatpush1.xpose.msra.mxu0 0.0
      %190 = vmatprep.subr.mxu0 0.0
      %191 = vmatpush1.xpose.msra.mxu0 0.0
      %192 = vmatprep.subr.mxu0 0.0
      %193 = vmatpush1.xpose.msra.mxu0 0.0
      %194 = vmatprep.subr.mxu0 0.0
      %195 = vmatpush1.xpose.msra.mxu0 0.0
      %196 = vmatprep.subr.mxu0 0.0
      %197 = vmatpush1.xpose.msra.mxu0 0.0
      %198 = vmatprep.subr.mxu0 0.0
      %199 = vmatpush1.xpose.msra.mxu0 0.0
      %200 = vmatprep.subr.mxu0 0.0
      %v201 = vand.u32 %v89, 4294901760
      %v202 = vsub.f32 %v89, %v201
      %v203 = vand.u32 %v202, 4294901760
      %v204 = vsub.f32 %v202, %v203
      %v205 = vand.u32 %v204, 4294901760
      %206 = vmatpush1.xpose.msra.mxu0 %v205
      %207 = vmatprep.subr.mxu0 0.0
      %v208 = vand.u32 %v86, 4294901760
      %v209 = vsub.f32 %v86, %v208
      %v210 = vand.u32 %v209, 4294901760
      %v211 = vsub.f32 %v209, %v210
      %v212 = vand.u32 %v211, 4294901760
      %213 = vmatpush1.xpose.msra.mxu0 %v212
      %214 = vmatprep.subr.mxu0 0.0
      %v215 = vand.u32 %v83, 4294901760
      %v216 = vsub.f32 %v83, %v215
      %v217 = vand.u32 %v216, 4294901760
      %v218 = vsub.f32 %v216, %v217
      %v219 = vand.u32 %v218, 4294901760
      %220 = vmatpush1.xpose.msra.mxu0 %v219
      %221 = vmatprep.subr.mxu0 0.0
      %v222 = vand.u32 %v80, 4294901760
      %v223 = vsub.f32 %v80, %v222
      %v224 = vand.u32 %v223, 4294901760
      %v225 = vsub.f32 %v223, %v224
      %v226 = vand.u32 %v225, 4294901760
      %227 = vmatpush1.xpose.msra.mxu0 %v226
      %228 = vmatprep.subr.mxu0 0.0
      %v229 = vand.u32 %v77, 4294901760
      %v230 = vsub.f32 %v77, %v229
      %v231 = vand.u32 %v230, 4294901760
      %v232 = vsub.f32 %v230, %v231
      %v233 = vand.u32 %v232, 4294901760
      %234 = vmatpush1.xpose.msra.mxu0 %v233
      %235 = vmatprep.subr.mxu0 0.0
      %v236 = vand.u32 %v74, 4294901760
      %v237 = vsub.f32 %v74, %v236
      %v238 = vand.u32 %v237, 4294901760
      %v239 = vsub.f32 %v237, %v238
      %v240 = vand.u32 %v239, 4294901760
      %241 = vmatpush1.xpose.msra.mxu0 %v240
      %242 = vmatprep.subr.mxu0 0.0
      %v243 = vand.u32 %v71, 4294901760
      %v244 = vsub.f32 %v71, %v243
      %v245 = vand.u32 %v244, 4294901760
      %v246 = vsub.f32 %v244, %v245
      %v247 = vand.u32 %v246, 4294901760
      %248 = vmatpush1.xpose.msra.mxu0 %v247
      %249 = vmatprep.subr.mxu0 0.0
      %v250 = vand.u32 %v68, 4294901760
      %v251 = vsub.f32 %v68, %v250
      %v252 = vand.u32 %v251, 4294901760
      %v253 = vsub.f32 %v251, %v252
      %v254 = vand.u32 %v253, 4294901760
      %255 = vmatpush1.xpose.msra.mxu0 %v254
      %256 = vmatprep.subr.mxu0 0.0
      %257 = vmatpush2.xpose.msra.mxu0 0.0
      %258 = vmatprep.subr.mxu0 0.0
      %259 = vmatpush2.xpose.msra.mxu0 0.0
      %260 = vmatprep.subr.mxu0 0.0
      %261 = vmatpush2.xpose.msra.mxu0 0.0
      %262 = vmatprep.subr.mxu0 0.0
      %263 = vmatpush2.xpose.msra.mxu0 0.0
      %264 = vmatprep.subr.mxu0 0.0
      %265 = vmatpush2.xpose.msra.mxu0 0.0
      %266 = vmatprep.subr.mxu0 0.0
      %267 = vmatpush2.xpose.msra.mxu0 0.0
      %268 = vmatprep.subr.mxu0 0.0
      %269 = vmatpush2.xpose.msra.mxu0 0.0
      %270 = vmatprep.subr.mxu0 0.0
      %271 = vmatpush2.xpose.msra.mxu0 0.0
      %272 = vmatprep.subr.mxu0 0.0
      %273 = vmatpush2.xpose.msra.mxu0 0.0
      %274 = vmatprep.subr.mxu0 0.0
      %275 = vmatpush2.xpose.msra.mxu0 0.0
      %276 = vmatprep.subr.mxu0 0.0
      %277 = vmatpush2.xpose.msra.mxu0 0.0
      %278 = vmatprep.subr.mxu0 0.0
      %279 = vmatpush2.xpose.msra.mxu0 0.0
      %280 = vmatprep.subr.mxu0 0.0
      %281 = vmatpush2.xpose.msra.mxu0 0.0
      %282 = vmatprep.subr.mxu0 0.0
      %283 = vmatpush2.xpose.msra.mxu0 0.0
      %284 = vmatprep.subr.mxu0 0.0
      %285 = vmatpush2.xpose.msra.mxu0 0.0
      %286 = vmatprep.subr.mxu0 0.0
      %287 = vmatpush2.xpose.msra.mxu0 0.0
      %288 = vmatprep.mubr.f32.mxu0 0.0
      %v289 = vand.u32 %v62, 4294901760
      %290 = vmatmul.mubr.f32.gmra.mxu0 %v289
      %v291 = vpop.f32.mrf.mxu0
      %v292 = vadd.f32 %v171, %v291
      %v293 = vpop.f32.mrf.mxu0
      %294 = vmatprep.mubr.f32.mxu0 0.0
      %v295 = vand.u32 %v65, 4294901760
      %296 = vmatmul.mubr.f32.gmra.mxu0 %v295
      %v297 = vpop.f32.mrf.mxu0
      %v298 = vadd.f32 %v181, %v297
      %v299 = vpop.f32.mrf.mxu0
      %300 = vdwg.mxu0
      %301 = vmatprep.subr.mxu0 0.0
      %302 = vmatpush1.xpose.msra.mxu0 0.0
      %303 = vmatprep.subr.mxu0 0.0
      %304 = vmatpush1.xpose.msra.mxu0 0.0
      %305 = vmatprep.subr.mxu0 0.0
      %306 = vmatpush1.xpose.msra.mxu0 0.0
      %307 = vmatprep.subr.mxu0 0.0
      %308 = vmatpush1.xpose.msra.mxu0 0.0
      %309 = vmatprep.subr.mxu0 0.0
      %310 = vmatpush1.xpose.msra.mxu0 0.0
      %311 = vmatprep.subr.mxu0 0.0
      %312 = vmatpush1.xpose.msra.mxu0 0.0
      %313 = vmatprep.subr.mxu0 0.0
      %314 = vmatpush1.xpose.msra.mxu0 0.0
      %315 = vmatprep.subr.mxu0 0.0
      %316 = vmatpush1.xpose.msra.mxu0 0.0
      %317 = vmatprep.subr.mxu0 0.0
      %v318 = vand.u32 %v89, 4294901760
      %v319 = vsub.f32 %v89, %v318
      %320 = vmatpush1.xpose.msra.mxu0 %v319
      %321 = vmatprep.subr.mxu0 0.0
      %v322 = vand.u32 %v86, 4294901760
      %v323 = vsub.f32 %v86, %v322
      %324 = vmatpush1.xpose.msra.mxu0 %v323
      %325 = vmatprep.subr.mxu0 0.0
      %v326 = vand.u32 %v83, 4294901760
      %v327 = vsub.f32 %v83, %v326
      %328 = vmatpush1.xpose.msra.mxu0 %v327
      %329 = vmatprep.subr.mxu0 0.0
      %v330 = vand.u32 %v80, 4294901760
      %v331 = vsub.f32 %v80, %v330
      %332 = vmatpush1.xpose.msra.mxu0 %v331
      %333 = vmatprep.subr.mxu0 0.0
      %v334 = vand.u32 %v77, 4294901760
      %v335 = vsub.f32 %v77, %v334
      %336 = vmatpush1.xpose.msra.mxu0 %v335
      %337 = vmatprep.subr.mxu0 0.0
      %v338 = vand.u32 %v74, 4294901760
      %v339 = vsub.f32 %v74, %v338
      %340 = vmatpush1.xpose.msra.mxu0 %v339
      %341 = vmatprep.subr.mxu0 0.0
      %v342 = vand.u32 %v71, 4294901760
      %v343 = vsub.f32 %v71, %v342
      %344 = vmatpush1.xpose.msra.mxu0 %v343
      %345 = vmatprep.subr.mxu0 0.0
      %v346 = vand.u32 %v68, 4294901760
      %v347 = vsub.f32 %v68, %v346
      %348 = vmatpush1.xpose.msra.mxu0 %v347
      %349 = vmatprep.subr.mxu0 0.0
      %350 = vmatpush2.xpose.msra.mxu0 0.0
      %351 = vmatprep.subr.mxu0 0.0
      %352 = vmatpush2.xpose.msra.mxu0 0.0
      %353 = vmatprep.subr.mxu0 0.0
      %354 = vmatpush2.xpose.msra.mxu0 0.0
      %355 = vmatprep.subr.mxu0 0.0
      %356 = vmatpush2.xpose.msra.mxu0 0.0
      %357 = vmatprep.subr.mxu0 0.0
      %358 = vmatpush2.xpose.msra.mxu0 0.0
      %359 = vmatprep.subr.mxu0 0.0
      %360 = vmatpush2.xpose.msra.mxu0 0.0
      %361 = vmatprep.subr.mxu0 0.0
      %362 = vmatpush2.xpose.msra.mxu0 0.0
      %363 = vmatprep.subr.mxu0 0.0
      %364 = vmatpush2.xpose.msra.mxu0 0.0
      %365 = vmatprep.subr.mxu0 0.0
      %366 = vmatpush2.xpose.msra.mxu0 0.0
      %367 = vmatprep.subr.mxu0 0.0
      %368 = vmatpush2.xpose.msra.mxu0 0.0
      %369 = vmatprep.subr.mxu0 0.0
      %370 = vmatpush2.xpose.msra.mxu0 0.0
      %371 = vmatprep.subr.mxu0 0.0
      %372 = vmatpush2.xpose.msra.mxu0 0.0
      %373 = vmatprep.subr.mxu0 0.0
      %374 = vmatpush2.xpose.msra.mxu0 0.0
      %375 = vmatprep.subr.mxu0 0.0
      %376 = vmatpush2.xpose.msra.mxu0 0.0
      %377 = vmatprep.subr.mxu0 0.0
      %378 = vmatpush2.xpose.msra.mxu0 0.0
      %379 = vmatprep.subr.mxu0 0.0
      %380 = vmatpush2.xpose.msra.mxu0 0.0
      %381 = vmatprep.mubr.f32.mxu0 0.0
      %v382 = vand.u32 %v62, 4294901760
      %v383 = vsub.f32 %v62, %v382
      %384 = vmatmul.mubr.f32.gmra.mxu0 %v383
      %v385 = vpop.f32.mrf.mxu0
      %v386 = vadd.f32 %v292, %v385
      %v387 = vpop.f32.mrf.mxu0
      %388 = vmatprep.mubr.f32.mxu0 0.0
      %v389 = vand.u32 %v65, 4294901760
      %v390 = vsub.f32 %v65, %v389
      %391 = vmatmul.mubr.f32.gmra.mxu0 %v390
      %v392 = vpop.f32.mrf.mxu0
      %v393 = vadd.f32 %v298, %v392
      %v394 = vpop.f32.mrf.mxu0
      %395 = vdwg.mxu0
      %396 = vmatprep.subr.mxu0 0.0
      %397 = vmatpush1.xpose.msra.mxu0 0.0
      %398 = vmatprep.subr.mxu0 0.0
      %399 = vmatpush1.xpose.msra.mxu0 0.0
      %400 = vmatprep.subr.mxu0 0.0
      %401 = vmatpush1.xpose.msra.mxu0 0.0
      %402 = vmatprep.subr.mxu0 0.0
      %403 = vmatpush1.xpose.msra.mxu0 0.0
      %404 = vmatprep.subr.mxu0 0.0
      %405 = vmatpush1.xpose.msra.mxu0 0.0
      %406 = vmatprep.subr.mxu0 0.0
      %407 = vmatpush1.xpose.msra.mxu0 0.0
      %408 = vmatprep.subr.mxu0 0.0
      %409 = vmatpush1.xpose.msra.mxu0 0.0
      %410 = vmatprep.subr.mxu0 0.0
      %411 = vmatpush1.xpose.msra.mxu0 0.0
      %412 = vmatprep.subr.mxu0 0.0
      %v413 = vand.u32 %v89, 4294901760
      %414 = vmatpush1.xpose.msra.mxu0 %v413
      %415 = vmatprep.subr.mxu0 0.0
      %v416 = vand.u32 %v86, 4294901760
      %417 = vmatpush1.xpose.msra.mxu0 %v416
      %418 = vmatprep.subr.mxu0 0.0
      %v419 = vand.u32 %v83, 4294901760
      %420 = vmatpush1.xpose.msra.mxu0 %v419
      %421 = vmatprep.subr.mxu0 0.0
      %v422 = vand.u32 %v80, 4294901760
      %423 = vmatpush1.xpose.msra.mxu0 %v422
      %424 = vmatprep.subr.mxu0 0.0
      %v425 = vand.u32 %v77, 4294901760
      %426 = vmatpush1.xpose.msra.mxu0 %v425
      %427 = vmatprep.subr.mxu0 0.0
      %v428 = vand.u32 %v74, 4294901760
      %429 = vmatpush1.xpose.msra.mxu0 %v428
      %430 = vmatprep.subr.mxu0 0.0
      %v431 = vand.u32 %v71, 4294901760
      %432 = vmatpush1.xpose.msra.mxu0 %v431
      %433 = vmatprep.subr.mxu0 0.0
      %v434 = vand.u32 %v68, 4294901760
      %435 = vmatpush1.xpose.msra.mxu0 %v434
      %436 = vmatprep.subr.mxu0 0.0
      %437 = vmatpush2.xpose.msra.mxu0 0.0
      %438 = vmatprep.subr.mxu0 0.0
      %439 = vmatpush2.xpose.msra.mxu0 0.0
      %440 = vmatprep.subr.mxu0 0.0
      %441 = vmatpush2.xpose.msra.mxu0 0.0
      %442 = vmatprep.subr.mxu0 0.0
      %443 = vmatpush2.xpose.msra.mxu0 0.0
      %444 = vmatprep.subr.mxu0 0.0
      %445 = vmatpush2.xpose.msra.mxu0 0.0
      %446 = vmatprep.subr.mxu0 0.0
      %447 = vmatpush2.xpose.msra.mxu0 0.0
      %448 = vmatprep.subr.mxu0 0.0
      %449 = vmatpush2.xpose.msra.mxu0 0.0
      %450 = vmatprep.subr.mxu0 0.0
      %451 = vmatpush2.xpose.msra.mxu0 0.0
      %452 = vmatprep.subr.mxu0 0.0
      %453 = vmatpush2.xpose.msra.mxu0 0.0
      %454 = vmatprep.subr.mxu0 0.0
      %455 = vmatpush2.xpose.msra.mxu0 0.0
      %456 = vmatprep.subr.mxu0 0.0
      %457 = vmatpush2.xpose.msra.mxu0 0.0
      %458 = vmatprep.subr.mxu0 0.0
      %459 = vmatpush2.xpose.msra.mxu0 0.0
      %460 = vmatprep.subr.mxu0 0.0
      %461 = vmatpush2.xpose.msra.mxu0 0.0
      %462 = vmatprep.subr.mxu0 0.0
      %463 = vmatpush2.xpose.msra.mxu0 0.0
      %464 = vmatprep.subr.mxu0 0.0
      %465 = vmatpush2.xpose.msra.mxu0 0.0
      %466 = vmatprep.subr.mxu0 0.0
      %467 = vmatpush2.xpose.msra.mxu0 0.0
      %468 = vmatprep.mubr.f32.mxu0 0.0
      %v469 = vand.u32 %v62, 4294901760
      %v470 = vsub.f32 %v62, %v469
      %v471 = vand.u32 %v470, 4294901760
      %472 = vmatmul.mubr.f32.gmra.mxu0 %v471
      %v473 = vpop.f32.mrf.mxu0
      %v474 = vadd.f32 %v386, %v473
      %v475 = vpop.f32.mrf.mxu0
      %476 = vmatprep.mubr.f32.mxu0 0.0
      %v477 = vand.u32 %v65, 4294901760
      %v478 = vsub.f32 %v65, %v477
      %v479 = vand.u32 %v478, 4294901760
      %480 = vmatmul.mubr.f32.gmra.mxu0 %v479
      %v481 = vpop.f32.mrf.mxu0
      %v482 = vadd.f32 %v393, %v481
      %v483 = vpop.f32.mrf.mxu0
      %484 = vdwg.mxu0
      %485 = vmatprep.subr.mxu0 0.0
      %486 = vmatpush1.xpose.msra.mxu0 0.0
      %487 = vmatprep.subr.mxu0 0.0
      %488 = vmatpush1.xpose.msra.mxu0 0.0
      %489 = vmatprep.subr.mxu0 0.0
      %490 = vmatpush1.xpose.msra.mxu0 0.0
      %491 = vmatprep.subr.mxu0 0.0
      %492 = vmatpush1.xpose.msra.mxu0 0.0
      %493 = vmatprep.subr.mxu0 0.0
      %494 = vmatpush1.xpose.msra.mxu0 0.0
      %495 = vmatprep.subr.mxu0 0.0
      %496 = vmatpush1.xpose.msra.mxu0 0.0
      %497 = vmatprep.subr.mxu0 0.0
      %498 = vmatpush1.xpose.msra.mxu0 0.0
      %499 = vmatprep.subr.mxu0 0.0
      %500 = vmatpush1.xpose.msra.mxu0 0.0
      %501 = vmatprep.subr.mxu0 0.0
      %v502 = vand.u32 %v89, 4294901760
      %v503 = vsub.f32 %v89, %v502
      %v504 = vand.u32 %v503, 4294901760
      %505 = vmatpush1.xpose.msra.mxu0 %v504
      %506 = vmatprep.subr.mxu0 0.0
      %v507 = vand.u32 %v86, 4294901760
      %v508 = vsub.f32 %v86, %v507
      %v509 = vand.u32 %v508, 4294901760
      %510 = vmatpush1.xpose.msra.mxu0 %v509
      %511 = vmatprep.subr.mxu0 0.0
      %v512 = vand.u32 %v83, 4294901760
      %v513 = vsub.f32 %v83, %v512
      %v514 = vand.u32 %v513, 4294901760
      %515 = vmatpush1.xpose.msra.mxu0 %v514
      %516 = vmatprep.subr.mxu0 0.0
      %v517 = vand.u32 %v80, 4294901760
      %v518 = vsub.f32 %v80, %v517
      %v519 = vand.u32 %v518, 4294901760
      %520 = vmatpush1.xpose.msra.mxu0 %v519
      %521 = vmatprep.subr.mxu0 0.0
      %v522 = vand.u32 %v77, 4294901760
      %v523 = vsub.f32 %v77, %v522
      %v524 = vand.u32 %v523, 4294901760
      %525 = vmatpush1.xpose.msra.mxu0 %v524
      %526 = vmatprep.subr.mxu0 0.0
      %v527 = vand.u32 %v74, 4294901760
      %v528 = vsub.f32 %v74, %v527
      %v529 = vand.u32 %v528, 4294901760
      %530 = vmatpush1.xpose.msra.mxu0 %v529
      %531 = vmatprep.subr.mxu0 0.0
      %v532 = vand.u32 %v71, 4294901760
      %v533 = vsub.f32 %v71, %v532
      %v534 = vand.u32 %v533, 4294901760
      %535 = vmatpush1.xpose.msra.mxu0 %v534
      %536 = vmatprep.subr.mxu0 0.0
      %v537 = vand.u32 %v68, 4294901760
      %v538 = vsub.f32 %v68, %v537
      %v539 = vand.u32 %v538, 4294901760
      %540 = vmatpush1.xpose.msra.mxu0 %v539
      %541 = vmatprep.subr.mxu0 0.0
      %542 = vmatpush2.xpose.msra.mxu0 0.0
      %543 = vmatprep.subr.mxu0 0.0
      %544 = vmatpush2.xpose.msra.mxu0 0.0
      %545 = vmatprep.subr.mxu0 0.0
      %546 = vmatpush2.xpose.msra.mxu0 0.0
      %547 = vmatprep.subr.mxu0 0.0
      %548 = vmatpush2.xpose.msra.mxu0 0.0
      %549 = vmatprep.subr.mxu0 0.0
      %550 = vmatpush2.xpose.msra.mxu0 0.0
      %551 = vmatprep.subr.mxu0 0.0
      %552 = vmatpush2.xpose.msra.mxu0 0.0
      %553 = vmatprep.subr.mxu0 0.0
      %554 = vmatpush2.xpose.msra.mxu0 0.0
      %555 = vmatprep.subr.mxu0 0.0
      %556 = vmatpush2.xpose.msra.mxu0 0.0
      %557 = vmatprep.subr.mxu0 0.0
      %558 = vmatpush2.xpose.msra.mxu0 0.0
      %559 = vmatprep.subr.mxu0 0.0
      %560 = vmatpush2.xpose.msra.mxu0 0.0
      %561 = vmatprep.subr.mxu0 0.0
      %562 = vmatpush2.xpose.msra.mxu0 0.0
      %563 = vmatprep.subr.mxu0 0.0
      %564 = vmatpush2.xpose.msra.mxu0 0.0
      %565 = vmatprep.subr.mxu0 0.0
      %566 = vmatpush2.xpose.msra.mxu0 0.0
      %567 = vmatprep.subr.mxu0 0.0
      %568 = vmatpush2.xpose.msra.mxu0 0.0
      %569 = vmatprep.subr.mxu0 0.0
      %570 = vmatpush2.xpose.msra.mxu0 0.0
      %571 = vmatprep.subr.mxu0 0.0
      %572 = vmatpush2.xpose.msra.mxu0 0.0
      %573 = vmatprep.mubr.f32.mxu0 0.0
      %v574 = vand.u32 %v62, 4294901760
      %575 = vmatmul.mubr.f32.gmra.mxu0 %v574
      %v576 = vpop.f32.mrf.mxu0
      %v577 = vadd.f32 %v474, %v576
      %v578 = vpop.f32.mrf.mxu0
      %579 = vmatprep.mubr.f32.mxu0 0.0
      %v580 = vand.u32 %v65, 4294901760
      %581 = vmatmul.mubr.f32.gmra.mxu0 %v580
      %v582 = vpop.f32.mrf.mxu0
      %v583 = vadd.f32 %v482, %v582
      %v584 = vpop.f32.mrf.mxu0
      %585 = vdwg.mxu0
      %586 = vmatprep.subr.mxu0 0.0
      %587 = vmatpush1.xpose.msra.mxu0 0.0
      %588 = vmatprep.subr.mxu0 0.0
      %589 = vmatpush1.xpose.msra.mxu0 0.0
      %590 = vmatprep.subr.mxu0 0.0
      %591 = vmatpush1.xpose.msra.mxu0 0.0
      %592 = vmatprep.subr.mxu0 0.0
      %593 = vmatpush1.xpose.msra.mxu0 0.0
      %594 = vmatprep.subr.mxu0 0.0
      %595 = vmatpush1.xpose.msra.mxu0 0.0
      %596 = vmatprep.subr.mxu0 0.0
      %597 = vmatpush1.xpose.msra.mxu0 0.0
      %598 = vmatprep.subr.mxu0 0.0
      %599 = vmatpush1.xpose.msra.mxu0 0.0
      %600 = vmatprep.subr.mxu0 0.0
      %601 = vmatpush1.xpose.msra.mxu0 0.0
      %602 = vmatprep.subr.mxu0 0.0
      %v603 = vand.u32 %v89, 4294901760
      %604 = vmatpush1.xpose.msra.mxu0 %v603
      %605 = vmatprep.subr.mxu0 0.0
      %v606 = vand.u32 %v86, 4294901760
      %607 = vmatpush1.xpose.msra.mxu0 %v606
      %608 = vmatprep.subr.mxu0 0.0
      %v609 = vand.u32 %v83, 4294901760
      %610 = vmatpush1.xpose.msra.mxu0 %v609
      %611 = vmatprep.subr.mxu0 0.0
      %v612 = vand.u32 %v80, 4294901760
      %613 = vmatpush1.xpose.msra.mxu0 %v612
      %614 = vmatprep.subr.mxu0 0.0
      %v615 = vand.u32 %v77, 4294901760
      %616 = vmatpush1.xpose.msra.mxu0 %v615
      %617 = vmatprep.subr.mxu0 0.0
      %v618 = vand.u32 %v74, 4294901760
      %619 = vmatpush1.xpose.msra.mxu0 %v618
      %620 = vmatprep.subr.mxu0 0.0
      %v621 = vand.u32 %v71, 4294901760
      %622 = vmatpush1.xpose.msra.mxu0 %v621
      %623 = vmatprep.subr.mxu0 0.0
      %v624 = vand.u32 %v68, 4294901760
      %625 = vmatpush1.xpose.msra.mxu0 %v624
      %626 = vmatprep.subr.mxu0 0.0
      %627 = vmatpush2.xpose.msra.mxu0 0.0
      %628 = vmatprep.subr.mxu0 0.0
      %629 = vmatpush2.xpose.msra.mxu0 0.0
      %630 = vmatprep.subr.mxu0 0.0
      %631 = vmatpush2.xpose.msra.mxu0 0.0
      %632 = vmatprep.subr.mxu0 0.0
      %633 = vmatpush2.xpose.msra.mxu0 0.0
      %634 = vmatprep.subr.mxu0 0.0
      %635 = vmatpush2.xpose.msra.mxu0 0.0
      %636 = vmatprep.subr.mxu0 0.0
      %637 = vmatpush2.xpose.msra.mxu0 0.0
      %638 = vmatprep.subr.mxu0 0.0
      %639 = vmatpush2.xpose.msra.mxu0 0.0
      %640 = vmatprep.subr.mxu0 0.0
      %641 = vmatpush2.xpose.msra.mxu0 0.0
      %642 = vmatprep.subr.mxu0 0.0
      %643 = vmatpush2.xpose.msra.mxu0 0.0
      %644 = vmatprep.subr.mxu0 0.0
      %645 = vmatpush2.xpose.msra.mxu0 0.0
      %646 = vmatprep.subr.mxu0 0.0
      %647 = vmatpush2.xpose.msra.mxu0 0.0
      %648 = vmatprep.subr.mxu0 0.0
      %649 = vmatpush2.xpose.msra.mxu0 0.0
      %650 = vmatprep.subr.mxu0 0.0
      %651 = vmatpush2.xpose.msra.mxu0 0.0
      %652 = vmatprep.subr.mxu0 0.0
      %653 = vmatpush2.xpose.msra.mxu0 0.0
      %654 = vmatprep.subr.mxu0 0.0
      %655 = vmatpush2.xpose.msra.mxu0 0.0
      %656 = vmatprep.subr.mxu0 0.0
      %657 = vmatpush2.xpose.msra.mxu0 0.0
      %658 = vmatprep.mubr.f32.mxu0 0.0
      %v659 = vand.u32 %v62, 4294901760
      %660 = vmatmul.mubr.f32.gmra.mxu0 %v659
      %v661 = vpop.f32.mrf.mxu0
      %v662 = vadd.f32 %v577, %v661
      %v663 = vpop.f32.mrf.mxu0
      %664 = vmatprep.mubr.f32.mxu0 0.0
      %v665 = vand.u32 %v65, 4294901760
      %666 = vmatmul.mubr.f32.gmra.mxu0 %v665
      %v667 = vpop.f32.mrf.mxu0
      %v668 = vadd.f32 %v583, %v667
      %v669 = vpop.f32.mrf.mxu0
      %670 = vdwg.mxu0
      %v671 = vld [vmem:[%s1] sm:$0x1]
      %673 = vset.pattern.permute.xlu0 0
      %674 = vperm.xlu0 %673, %v38
      %v675 = vpop.permute.xlu0 %674
      %678 = vset.pattern.permute.xlu0 0
      %679 = vperm.xlu0 %678, %v39
      %v680 = vpop.permute.xlu0 %679
      %v682 = vadd.f32 %v675, %v662
      %v683 = vadd.f32 %v680, %v668
      %vm684 = vcmask 523264
      %685 = vst.msk [vmem:[#allocation2] sm:$0xff] %vm684, %v682
      %686 = vst.msk [vmem:[#allocation2 + $0x8] sm:$0xff] %vm684, %v683
      %v687 = vlaneseq
      %v688 = vshrl.u32 %v687, 7
      %v689 = vsub.s32 0, %v688
      %v690 = vrot.slane %v671, %v689
      %vm691 = vcmp.eq.s32.totalorder %v690, %v36
      %vm692 = vcmp.eq.s32.totalorder %v690, %v37
      %v693 = vsel %vm691, 1, 0
      %v694 = vsel %vm692, 1, 0
      %v695 = vcvt.s32.f32 %v693
      %v696 = vcvt.s32.f32 %v694
      %v697 = vmul.f32 %v695, %v682
      %v698 = vmul.f32 %v696, %v683
      %v699 = vsel %vm684, %v697, 0.0
      %v700 = vsel %vm684, %v698, 0.0
      %v701 = vadd.f32 %v699, %v700
      %v702 = vrot.slane %v701, 4
      %v703 = vadd.f32 %v701, %v702
      %v704 = vrot.slane %v703, 2
      %v705 = vadd.f32 %v703, %v704
      %v706 = vrot.slane %v705, 1
      %v707 = vadd.f32 %v705, %v706
      %vm708 = vcmask 516096
      %709 = vst.msk [vmem:[#allocation3] sm:$0x1] %vm708, %v707
      %710 = vst.msk [vmem:[#allocation4] sm:$0x1] %vm708, %v671
      %711 = vst.msk [vmem:[#allocation5] sm:$0x1] %vm708, %v671
    $region41: #{tpu_custom_call.1} parent=1 // pred_fallthru
      _
    %v712 = vld [vmem:[#allocation2] sm:$0xff]
    %v713 = vld [vmem:[#allocation2 + $0x8] sm:$0xff]
    %v714 = vld [vmem:[#allocation3] sm:$0x1]
    %v715 = vld [vmem:[#allocation4] sm:$0x1]
    %v716 = vld [vmem:[#allocation5] sm:$0x1]
    loop: start=0, step=1, limit=8
    $region42: #{tpu_custom_call.1} parent=1 // loop_pre_header
      _
    $region43: #{tpu_custom_call.1} parent=1 // loop_header
      %s718 = sphi 0, %s722
      %p719 = scmp.ge.s32.totalorder %s718, 8
      %v723 = vphi %v712, %v2467
      %v724 = vphi %v713, %v2468
      %v725 = vphi %v714, %v1913
      %v726 = vphi %v715, %v1359
      %v727 = vphi %v716, %v1915
    $region44: #{tpu_custom_call.1} parent=1 // loop_header_branch
      %721 = sbr.rel (%p719) target = $region48
    $region45: #{tpu_custom_call.1} parent=1 // loop_body
      %p728 = scmp.eq.s32.totalorder %s718, 0
      %p729 = pnand %p48, %p728
      %p730 = pneg %p729
      %s731 = scalar_lea.vmem %s2, %s718
      %v732 = vld [vmem:[%s731] sm:$0x1]
      %s733 = scalar_select %p730, 1, 0
      %v734 = vstv %s733
      %vm735 = vcmp.eq.s32.totalorder %v734, 1
      %v736 = vsel %vm735, 0.0, %v732
      %s737 = smul.u32 %s718, 64
      %s738 = scalar_lea.vmem %s0, %s737
      %v739 = vld [vmem:[%s738] sm:$0xff]
      %v740 = vld [vmem:[%s738 + $0x8] sm:$0xff]
      %v741 = vld [vmem:[%s738 + $0x10] sm:$0xff]
      %v742 = vld [vmem:[%s738 + $0x18] sm:$0xff]
      %v743 = vld [vmem:[%s738 + $0x20] sm:$0xff]
      %v744 = vld [vmem:[%s738 + $0x28] sm:$0xff]
      %v745 = vld [vmem:[%s738 + $0x30] sm:$0xff]
      %v746 = vld [vmem:[%s738 + $0x38] sm:$0xff]
      %vm747 = vcmask 130048
      %v749 = vsel %vm747, %v33, 0
      %v752 = vsel %vm747, %v34, 0
      %v755 = vsel %vm747, %v739, 0
      %v758 = vsel %vm747, %v740, 0
      %v761 = vsel %vm747, %v741, 0
      %v764 = vsel %vm747, %v742, 0
      %v767 = vsel %vm747, %v743, 0
      %v770 = vsel %vm747, %v744, 0
      %v773 = vsel %vm747, %v745, 0
      %v776 = vsel %vm747, %v746, 0
      %778 = vmatprep.subr.mxu0 0.0
      %779 = vmatpush1.xpose.msra.mxu0 0.0
      %780 = vmatprep.subr.mxu0 0.0
      %781 = vmatpush1.xpose.msra.mxu0 0.0
      %782 = vmatprep.subr.mxu0 0.0
      %783 = vmatpush1.xpose.msra.mxu0 0.0
      %784 = vmatprep.subr.mxu0 0.0
      %785 = vmatpush1.xpose.msra.mxu0 0.0
      %786 = vmatprep.subr.mxu0 0.0
      %787 = vmatpush1.xpose.msra.mxu0 0.0
      %788 = vmatprep.subr.mxu0 0.0
      %789 = vmatpush1.xpose.msra.mxu0 0.0
      %790 = vmatprep.subr.mxu0 0.0
      %791 = vmatpush1.xpose.msra.mxu0 0.0
      %792 = vmatprep.subr.mxu0 0.0
      %793 = vmatpush1.xpose.msra.mxu0 0.0
      %794 = vmatprep.subr.mxu0 0.0
      %v795 = vand.u32 %v776, 4294901760
      %796 = vmatpush1.xpose.msra.mxu0 %v795
      %797 = vmatprep.subr.mxu0 0.0
      %v798 = vand.u32 %v773, 4294901760
      %799 = vmatpush1.xpose.msra.mxu0 %v798
      %800 = vmatprep.subr.mxu0 0.0
      %v801 = vand.u32 %v770, 4294901760
      %802 = vmatpush1.xpose.msra.mxu0 %v801
      %803 = vmatprep.subr.mxu0 0.0
      %v804 = vand.u32 %v767, 4294901760
      %805 = vmatpush1.xpose.msra.mxu0 %v804
      %806 = vmatprep.subr.mxu0 0.0
      %v807 = vand.u32 %v764, 4294901760
      %808 = vmatpush1.xpose.msra.mxu0 %v807
      %809 = vmatprep.subr.mxu0 0.0
      %v810 = vand.u32 %v761, 4294901760
      %811 = vmatpush1.xpose.msra.mxu0 %v810
      %812 = vmatprep.subr.mxu0 0.0
      %v813 = vand.u32 %v758, 4294901760
      %814 = vmatpush1.xpose.msra.mxu0 %v813
      %815 = vmatprep.subr.mxu0 0.0
      %v816 = vand.u32 %v755, 4294901760
      %817 = vmatpush1.xpose.msra.mxu0 %v816
      %818 = vmatprep.subr.mxu0 0.0
      %819 = vmatpush2.xpose.msra.mxu0 0.0
      %820 = vmatprep.subr.mxu0 0.0
      %821 = vmatpush2.xpose.msra.mxu0 0.0
      %822 = vmatprep.subr.mxu0 0.0
      %823 = vmatpush2.xpose.msra.mxu0 0.0
      %824 = vmatprep.subr.mxu0 0.0
      %825 = vmatpush2.xpose.msra.mxu0 0.0
      %826 = vmatprep.subr.mxu0 0.0
      %827 = vmatpush2.xpose.msra.mxu0 0.0
      %828 = vmatprep.subr.mxu0 0.0
      %829 = vmatpush2.xpose.msra.mxu0 0.0
      %830 = vmatprep.subr.mxu0 0.0
      %831 = vmatpush2.xpose.msra.mxu0 0.0
      %832 = vmatprep.subr.mxu0 0.0
      %833 = vmatpush2.xpose.msra.mxu0 0.0
      %834 = vmatprep.subr.mxu0 0.0
      %835 = vmatpush2.xpose.msra.mxu0 0.0
      %836 = vmatprep.subr.mxu0 0.0
      %837 = vmatpush2.xpose.msra.mxu0 0.0
      %838 = vmatprep.subr.mxu0 0.0
      %839 = vmatpush2.xpose.msra.mxu0 0.0
      %840 = vmatprep.subr.mxu0 0.0
      %841 = vmatpush2.xpose.msra.mxu0 0.0
      %842 = vmatprep.subr.mxu0 0.0
      %843 = vmatpush2.xpose.msra.mxu0 0.0
      %844 = vmatprep.subr.mxu0 0.0
      %845 = vmatpush2.xpose.msra.mxu0 0.0
      %846 = vmatprep.subr.mxu0 0.0
      %847 = vmatpush2.xpose.msra.mxu0 0.0
      %848 = vmatprep.subr.mxu0 0.0
      %849 = vmatpush2.xpose.msra.mxu0 0.0
      %850 = vmatprep.mubr.f32.mxu0 0.0
      %v851 = vand.u32 %v749, 4294901760
      %v852 = vsub.f32 %v749, %v851
      %v853 = vand.u32 %v852, 4294901760
      %v854 = vsub.f32 %v852, %v853
      %v855 = vand.u32 %v854, 4294901760
      %856 = vmatmul.mubr.f32.gmra.mxu0 %v855
      %v857 = vpop.f32.mrf.mxu0
      %v858 = vadd.f32 0.0, %v857
      %v859 = vpop.f32.mrf.mxu0
      %860 = vmatprep.mubr.f32.mxu0 0.0
      %v861 = vand.u32 %v752, 4294901760
      %v862 = vsub.f32 %v752, %v861
      %v863 = vand.u32 %v862, 4294901760
      %v864 = vsub.f32 %v862, %v863
      %v865 = vand.u32 %v864, 4294901760
      %866 = vmatmul.mubr.f32.gmra.mxu0 %v865
      %v867 = vpop.f32.mrf.mxu0
      %v868 = vadd.f32 0.0, %v867
      %v869 = vpop.f32.mrf.mxu0
      %870 = vdwg.mxu0
      %871 = vmatprep.subr.mxu0 0.0
      %872 = vmatpush1.xpose.msra.mxu0 0.0
      %873 = vmatprep.subr.mxu0 0.0
      %874 = vmatpush1.xpose.msra.mxu0 0.0
      %875 = vmatprep.subr.mxu0 0.0
      %876 = vmatpush1.xpose.msra.mxu0 0.0
      %877 = vmatprep.subr.mxu0 0.0
      %878 = vmatpush1.xpose.msra.mxu0 0.0
      %879 = vmatprep.subr.mxu0 0.0
      %880 = vmatpush1.xpose.msra.mxu0 0.0
      %881 = vmatprep.subr.mxu0 0.0
      %882 = vmatpush1.xpose.msra.mxu0 0.0
      %883 = vmatprep.subr.mxu0 0.0
      %884 = vmatpush1.xpose.msra.mxu0 0.0
      %885 = vmatprep.subr.mxu0 0.0
      %886 = vmatpush1.xpose.msra.mxu0 0.0
      %887 = vmatprep.subr.mxu0 0.0
      %v888 = vand.u32 %v776, 4294901760
      %v889 = vsub.f32 %v776, %v888
      %v890 = vand.u32 %v889, 4294901760
      %v891 = vsub.f32 %v889, %v890
      %v892 = vand.u32 %v891, 4294901760
      %893 = vmatpush1.xpose.msra.mxu0 %v892
      %894 = vmatprep.subr.mxu0 0.0
      %v895 = vand.u32 %v773, 4294901760
      %v896 = vsub.f32 %v773, %v895
      %v897 = vand.u32 %v896, 4294901760
      %v898 = vsub.f32 %v896, %v897
      %v899 = vand.u32 %v898, 4294901760
      %900 = vmatpush1.xpose.msra.mxu0 %v899
      %901 = vmatprep.subr.mxu0 0.0
      %v902 = vand.u32 %v770, 4294901760
      %v903 = vsub.f32 %v770, %v902
      %v904 = vand.u32 %v903, 4294901760
      %v905 = vsub.f32 %v903, %v904
      %v906 = vand.u32 %v905, 4294901760
      %907 = vmatpush1.xpose.msra.mxu0 %v906
      %908 = vmatprep.subr.mxu0 0.0
      %v909 = vand.u32 %v767, 4294901760
      %v910 = vsub.f32 %v767, %v909
      %v911 = vand.u32 %v910, 4294901760
      %v912 = vsub.f32 %v910, %v911
      %v913 = vand.u32 %v912, 4294901760
      %914 = vmatpush1.xpose.msra.mxu0 %v913
      %915 = vmatprep.subr.mxu0 0.0
      %v916 = vand.u32 %v764, 4294901760
      %v917 = vsub.f32 %v764, %v916
      %v918 = vand.u32 %v917, 4294901760
      %v919 = vsub.f32 %v917, %v918
      %v920 = vand.u32 %v919, 4294901760
      %921 = vmatpush1.xpose.msra.mxu0 %v920
      %922 = vmatprep.subr.mxu0 0.0
      %v923 = vand.u32 %v761, 4294901760
      %v924 = vsub.f32 %v761, %v923
      %v925 = vand.u32 %v924, 4294901760
      %v926 = vsub.f32 %v924, %v925
      %v927 = vand.u32 %v926, 4294901760
      %928 = vmatpush1.xpose.msra.mxu0 %v927
      %929 = vmatprep.subr.mxu0 0.0
      %v930 = vand.u32 %v758, 4294901760
      %v931 = vsub.f32 %v758, %v930
      %v932 = vand.u32 %v931, 4294901760
      %v933 = vsub.f32 %v931, %v932
      %v934 = vand.u32 %v933, 4294901760
      %935 = vmatpush1.xpose.msra.mxu0 %v934
      %936 = vmatprep.subr.mxu0 0.0
      %v937 = vand.u32 %v755, 4294901760
      %v938 = vsub.f32 %v755, %v937
      %v939 = vand.u32 %v938, 4294901760
      %v940 = vsub.f32 %v938, %v939
      %v941 = vand.u32 %v940, 4294901760
      %942 = vmatpush1.xpose.msra.mxu0 %v941
      %943 = vmatprep.subr.mxu0 0.0
      %944 = vmatpush2.xpose.msra.mxu0 0.0
      %945 = vmatprep.subr.mxu0 0.0
      %946 = vmatpush2.xpose.msra.mxu0 0.0
      %947 = vmatprep.subr.mxu0 0.0
      %948 = vmatpush2.xpose.msra.mxu0 0.0
      %949 = vmatprep.subr.mxu0 0.0
      %950 = vmatpush2.xpose.msra.mxu0 0.0
      %951 = vmatprep.subr.mxu0 0.0
      %952 = vmatpush2.xpose.msra.mxu0 0.0
      %953 = vmatprep.subr.mxu0 0.0
      %954 = vmatpush2.xpose.msra.mxu0 0.0
      %955 = vmatprep.subr.mxu0 0.0
      %956 = vmatpush2.xpose.msra.mxu0 0.0
      %957 = vmatprep.subr.mxu0 0.0
      %958 = vmatpush2.xpose.msra.mxu0 0.0
      %959 = vmatprep.subr.mxu0 0.0
      %960 = vmatpush2.xpose.msra.mxu0 0.0
      %961 = vmatprep.subr.mxu0 0.0
      %962 = vmatpush2.xpose.msra.mxu0 0.0
      %963 = vmatprep.subr.mxu0 0.0
      %964 = vmatpush2.xpose.msra.mxu0 0.0
      %965 = vmatprep.subr.mxu0 0.0
      %966 = vmatpush2.xpose.msra.mxu0 0.0
      %967 = vmatprep.subr.mxu0 0.0
      %968 = vmatpush2.xpose.msra.mxu0 0.0
      %969 = vmatprep.subr.mxu0 0.0
      %970 = vmatpush2.xpose.msra.mxu0 0.0
      %971 = vmatprep.subr.mxu0 0.0
      %972 = vmatpush2.xpose.msra.mxu0 0.0
      %973 = vmatprep.subr.mxu0 0.0
      %974 = vmatpush2.xpose.msra.mxu0 0.0
      %975 = vmatprep.mubr.f32.mxu0 0.0
      %v976 = vand.u32 %v749, 4294901760
      %977 = vmatmul.mubr.f32.gmra.mxu0 %v976
      %v978 = vpop.f32.mrf.mxu0
      %v979 = vadd.f32 %v858, %v978
      %v980 = vpop.f32.mrf.mxu0
      %981 = vmatprep.mubr.f32.mxu0 0.0
      %v982 = vand.u32 %v752, 4294901760
      %983 = vmatmul.mubr.f32.gmra.mxu0 %v982
      %v984 = vpop.f32.mrf.mxu0
      %v985 = vadd.f32 %v868, %v984
      %v986 = vpop.f32.mrf.mxu0
      %987 = vdwg.mxu0
      %988 = vmatprep.subr.mxu0 0.0
      %989 = vmatpush1.xpose.msra.mxu0 0.0
      %990 = vmatprep.subr.mxu0 0.0
      %991 = vmatpush1.xpose.msra.mxu0 0.0
      %992 = vmatprep.subr.mxu0 0.0
      %993 = vmatpush1.xpose.msra.mxu0 0.0
      %994 = vmatprep.subr.mxu0 0.0
      %995 = vmatpush1.xpose.msra.mxu0 0.0
      %996 = vmatprep.subr.mxu0 0.0
      %997 = vmatpush1.xpose.msra.mxu0 0.0
      %998 = vmatprep.subr.mxu0 0.0
      %999 = vmatpush1.xpose.msra.mxu0 0.0
      %1000 = vmatprep.subr.mxu0 0.0
      %1001 = vmatpush1.xpose.msra.mxu0 0.0
      %1002 = vmatprep.subr.mxu0 0.0
      %1003 = vmatpush1.xpose.msra.mxu0 0.0
      %1004 = vmatprep.subr.mxu0 0.0
      %v1005 = vand.u32 %v776, 4294901760
      %v1006 = vsub.f32 %v776, %v1005
      %1007 = vmatpush1.xpose.msra.mxu0 %v1006
      %1008 = vmatprep.subr.mxu0 0.0
      %v1009 = vand.u32 %v773, 4294901760
      %v1010 = vsub.f32 %v773, %v1009
      %1011 = vmatpush1.xpose.msra.mxu0 %v1010
      %1012 = vmatprep.subr.mxu0 0.0
      %v1013 = vand.u32 %v770, 4294901760
      %v1014 = vsub.f32 %v770, %v1013
      %1015 = vmatpush1.xpose.msra.mxu0 %v1014
      %1016 = vmatprep.subr.mxu0 0.0
      %v1017 = vand.u32 %v767, 4294901760
      %v1018 = vsub.f32 %v767, %v1017
      %1019 = vmatpush1.xpose.msra.mxu0 %v1018
      %1020 = vmatprep.subr.mxu0 0.0
      %v1021 = vand.u32 %v764, 4294901760
      %v1022 = vsub.f32 %v764, %v1021
      %1023 = vmatpush1.xpose.msra.mxu0 %v1022
      %1024 = vmatprep.subr.mxu0 0.0
      %v1025 = vand.u32 %v761, 4294901760
      %v1026 = vsub.f32 %v761, %v1025
      %1027 = vmatpush1.xpose.msra.mxu0 %v1026
      %1028 = vmatprep.subr.mxu0 0.0
      %v1029 = vand.u32 %v758, 4294901760
      %v1030 = vsub.f32 %v758, %v1029
      %1031 = vmatpush1.xpose.msra.mxu0 %v1030
      %1032 = vmatprep.subr.mxu0 0.0
      %v1033 = vand.u32 %v755, 4294901760
      %v1034 = vsub.f32 %v755, %v1033
      %1035 = vmatpush1.xpose.msra.mxu0 %v1034
      %1036 = vmatprep.subr.mxu0 0.0
      %1037 = vmatpush2.xpose.msra.mxu0 0.0
      %1038 = vmatprep.subr.mxu0 0.0
      %1039 = vmatpush2.xpose.msra.mxu0 0.0
      %1040 = vmatprep.subr.mxu0 0.0
      %1041 = vmatpush2.xpose.msra.mxu0 0.0
      %1042 = vmatprep.subr.mxu0 0.0
      %1043 = vmatpush2.xpose.msra.mxu0 0.0
      %1044 = vmatprep.subr.mxu0 0.0
      %1045 = vmatpush2.xpose.msra.mxu0 0.0
      %1046 = vmatprep.subr.mxu0 0.0
      %1047 = vmatpush2.xpose.msra.mxu0 0.0
      %1048 = vmatprep.subr.mxu0 0.0
      %1049 = vmatpush2.xpose.msra.mxu0 0.0
      %1050 = vmatprep.subr.mxu0 0.0
      %1051 = vmatpush2.xpose.msra.mxu0 0.0
      %1052 = vmatprep.subr.mxu0 0.0
      %1053 = vmatpush2.xpose.msra.mxu0 0.0
      %1054 = vmatprep.subr.mxu0 0.0
      %1055 = vmatpush2.xpose.msra.mxu0 0.0
      %1056 = vmatprep.subr.mxu0 0.0
      %1057 = vmatpush2.xpose.msra.mxu0 0.0
      %1058 = vmatprep.subr.mxu0 0.0
      %1059 = vmatpush2.xpose.msra.mxu0 0.0
      %1060 = vmatprep.subr.mxu0 0.0
      %1061 = vmatpush2.xpose.msra.mxu0 0.0
      %1062 = vmatprep.subr.mxu0 0.0
      %1063 = vmatpush2.xpose.msra.mxu0 0.0
      %1064 = vmatprep.subr.mxu0 0.0
      %1065 = vmatpush2.xpose.msra.mxu0 0.0
      %1066 = vmatprep.subr.mxu0 0.0
      %1067 = vmatpush2.xpose.msra.mxu0 0.0
      %1068 = vmatprep.mubr.f32.mxu0 0.0
      %v1069 = vand.u32 %v749, 4294901760
      %v1070 = vsub.f32 %v749, %v1069
      %1071 = vmatmul.mubr.f32.gmra.mxu0 %v1070
      %v1072 = vpop.f32.mrf.mxu0
      %v1073 = vadd.f32 %v979, %v1072
      %v1074 = vpop.f32.mrf.mxu0
      %1075 = vmatprep.mubr.f32.mxu0 0.0
      %v1076 = vand.u32 %v752, 4294901760
      %v1077 = vsub.f32 %v752, %v1076
      %1078 = vmatmul.mubr.f32.gmra.mxu0 %v1077
      %v1079 = vpop.f32.mrf.mxu0
      %v1080 = vadd.f32 %v985, %v1079
      %v1081 = vpop.f32.mrf.mxu0
      %1082 = vdwg.mxu0
      %1083 = vmatprep.subr.mxu0 0.0
      %1084 = vmatpush1.xpose.msra.mxu0 0.0
      %1085 = vmatprep.subr.mxu0 0.0
      %1086 = vmatpush1.xpose.msra.mxu0 0.0
      %1087 = vmatprep.subr.mxu0 0.0
      %1088 = vmatpush1.xpose.msra.mxu0 0.0
      %1089 = vmatprep.subr.mxu0 0.0
      %1090 = vmatpush1.xpose.msra.mxu0 0.0
      %1091 = vmatprep.subr.mxu0 0.0
      %1092 = vmatpush1.xpose.msra.mxu0 0.0
      %1093 = vmatprep.subr.mxu0 0.0
      %1094 = vmatpush1.xpose.msra.mxu0 0.0
      %1095 = vmatprep.subr.mxu0 0.0
      %1096 = vmatpush1.xpose.msra.mxu0 0.0
      %1097 = vmatprep.subr.mxu0 0.0
      %1098 = vmatpush1.xpose.msra.mxu0 0.0
      %1099 = vmatprep.subr.mxu0 0.0
      %v1100 = vand.u32 %v776, 4294901760
      %1101 = vmatpush1.xpose.msra.mxu0 %v1100
      %1102 = vmatprep.subr.mxu0 0.0
      %v1103 = vand.u32 %v773, 4294901760
      %1104 = vmatpush1.xpose.msra.mxu0 %v1103
      %1105 = vmatprep.subr.mxu0 0.0
      %v1106 = vand.u32 %v770, 4294901760
      %1107 = vmatpush1.xpose.msra.mxu0 %v1106
      %1108 = vmatprep.subr.mxu0 0.0
      %v1109 = vand.u32 %v767, 4294901760
      %1110 = vmatpush1.xpose.msra.mxu0 %v1109
      %1111 = vmatprep.subr.mxu0 0.0
      %v1112 = vand.u32 %v764, 4294901760
      %1113 = vmatpush1.xpose.msra.mxu0 %v1112
      %1114 = vmatprep.subr.mxu0 0.0
      %v1115 = vand.u32 %v761, 4294901760
      %1116 = vmatpush1.xpose.msra.mxu0 %v1115
      %1117 = vmatprep.subr.mxu0 0.0
      %v1118 = vand.u32 %v758, 4294901760
      %1119 = vmatpush1.xpose.msra.mxu0 %v1118
      %1120 = vmatprep.subr.mxu0 0.0
      %v1121 = vand.u32 %v755, 4294901760
      %1122 = vmatpush1.xpose.msra.mxu0 %v1121
      %1123 = vmatprep.subr.mxu0 0.0
      %1124 = vmatpush2.xpose.msra.mxu0 0.0
      %1125 = vmatprep.subr.mxu0 0.0
      %1126 = vmatpush2.xpose.msra.mxu0 0.0
      %1127 = vmatprep.subr.mxu0 0.0
      %1128 = vmatpush2.xpose.msra.mxu0 0.0
      %1129 = vmatprep.subr.mxu0 0.0
      %1130 = vmatpush2.xpose.msra.mxu0 0.0
      %1131 = vmatprep.subr.mxu0 0.0
      %1132 = vmatpush2.xpose.msra.mxu0 0.0
      %1133 = vmatprep.subr.mxu0 0.0
      %1134 = vmatpush2.xpose.msra.mxu0 0.0
      %1135 = vmatprep.subr.mxu0 0.0
      %1136 = vmatpush2.xpose.msra.mxu0 0.0
      %1137 = vmatprep.subr.mxu0 0.0
      %1138 = vmatpush2.xpose.msra.mxu0 0.0
      %1139 = vmatprep.subr.mxu0 0.0
      %1140 = vmatpush2.xpose.msra.mxu0 0.0
      %1141 = vmatprep.subr.mxu0 0.0
      %1142 = vmatpush2.xpose.msra.mxu0 0.0
      %1143 = vmatprep.subr.mxu0 0.0
      %1144 = vmatpush2.xpose.msra.mxu0 0.0
      %1145 = vmatprep.subr.mxu0 0.0
      %1146 = vmatpush2.xpose.msra.mxu0 0.0
      %1147 = vmatprep.subr.mxu0 0.0
      %1148 = vmatpush2.xpose.msra.mxu0 0.0
      %1149 = vmatprep.subr.mxu0 0.0
      %1150 = vmatpush2.xpose.msra.mxu0 0.0
      %1151 = vmatprep.subr.mxu0 0.0
      %1152 = vmatpush2.xpose.msra.mxu0 0.0
      %1153 = vmatprep.subr.mxu0 0.0
      %1154 = vmatpush2.xpose.msra.mxu0 0.0
      %1155 = vmatprep.mubr.f32.mxu0 0.0
      %v1156 = vand.u32 %v749, 4294901760
      %v1157 = vsub.f32 %v749, %v1156
      %v1158 = vand.u32 %v1157, 4294901760
      %1159 = vmatmul.mubr.f32.gmra.mxu0 %v1158
      %v1160 = vpop.f32.mrf.mxu0
      %v1161 = vadd.f32 %v1073, %v1160
      %v1162 = vpop.f32.mrf.mxu0
      %1163 = vmatprep.mubr.f32.mxu0 0.0
      %v1164 = vand.u32 %v752, 4294901760
      %v1165 = vsub.f32 %v752, %v1164
      %v1166 = vand.u32 %v1165, 4294901760
      %1167 = vmatmul.mubr.f32.gmra.mxu0 %v1166
      %v1168 = vpop.f32.mrf.mxu0
      %v1169 = vadd.f32 %v1080, %v1168
      %v1170 = vpop.f32.mrf.mxu0
      %1171 = vdwg.mxu0
      %1172 = vmatprep.subr.mxu0 0.0
      %1173 = vmatpush1.xpose.msra.mxu0 0.0
      %1174 = vmatprep.subr.mxu0 0.0
      %1175 = vmatpush1.xpose.msra.mxu0 0.0
      %1176 = vmatprep.subr.mxu0 0.0
      %1177 = vmatpush1.xpose.msra.mxu0 0.0
      %1178 = vmatprep.subr.mxu0 0.0
      %1179 = vmatpush1.xpose.msra.mxu0 0.0
      %1180 = vmatprep.subr.mxu0 0.0
      %1181 = vmatpush1.xpose.msra.mxu0 0.0
      %1182 = vmatprep.subr.mxu0 0.0
      %1183 = vmatpush1.xpose.msra.mxu0 0.0
      %1184 = vmatprep.subr.mxu0 0.0
      %1185 = vmatpush1.xpose.msra.mxu0 0.0
      %1186 = vmatprep.subr.mxu0 0.0
      %1187 = vmatpush1.xpose.msra.mxu0 0.0
      %1188 = vmatprep.subr.mxu0 0.0
      %v1189 = vand.u32 %v776, 4294901760
      %v1190 = vsub.f32 %v776, %v1189
      %v1191 = vand.u32 %v1190, 4294901760
      %1192 = vmatpush1.xpose.msra.mxu0 %v1191
      %1193 = vmatprep.subr.mxu0 0.0
      %v1194 = vand.u32 %v773, 4294901760
      %v1195 = vsub.f32 %v773, %v1194
      %v1196 = vand.u32 %v1195, 4294901760
      %1197 = vmatpush1.xpose.msra.mxu0 %v1196
      %1198 = vmatprep.subr.mxu0 0.0
      %v1199 = vand.u32 %v770, 4294901760
      %v1200 = vsub.f32 %v770, %v1199
      %v1201 = vand.u32 %v1200, 4294901760
      %1202 = vmatpush1.xpose.msra.mxu0 %v1201
      %1203 = vmatprep.subr.mxu0 0.0
      %v1204 = vand.u32 %v767, 4294901760
      %v1205 = vsub.f32 %v767, %v1204
      %v1206 = vand.u32 %v1205, 4294901760
      %1207 = vmatpush1.xpose.msra.mxu0 %v1206
      %1208 = vmatprep.subr.mxu0 0.0
      %v1209 = vand.u32 %v764, 4294901760
      %v1210 = vsub.f32 %v764, %v1209
      %v1211 = vand.u32 %v1210, 4294901760
      %1212 = vmatpush1.xpose.msra.mxu0 %v1211
      %1213 = vmatprep.subr.mxu0 0.0
      %v1214 = vand.u32 %v761, 4294901760
      %v1215 = vsub.f32 %v761, %v1214
      %v1216 = vand.u32 %v1215, 4294901760
      %1217 = vmatpush1.xpose.msra.mxu0 %v1216
      %1218 = vmatprep.subr.mxu0 0.0
      %v1219 = vand.u32 %v758, 4294901760
      %v1220 = vsub.f32 %v758, %v1219
      %v1221 = vand.u32 %v1220, 4294901760
      %1222 = vmatpush1.xpose.msra.mxu0 %v1221
      %1223 = vmatprep.subr.mxu0 0.0
      %v1224 = vand.u32 %v755, 4294901760
      %v1225 = vsub.f32 %v755, %v1224
      %v1226 = vand.u32 %v1225, 4294901760
      %1227 = vmatpush1.xpose.msra.mxu0 %v1226
      %1228 = vmatprep.subr.mxu0 0.0
      %1229 = vmatpush2.xpose.msra.mxu0 0.0
      %1230 = vmatprep.subr.mxu0 0.0
      %1231 = vmatpush2.xpose.msra.mxu0 0.0
      %1232 = vmatprep.subr.mxu0 0.0
      %1233 = vmatpush2.xpose.msra.mxu0 0.0
      %1234 = vmatprep.subr.mxu0 0.0
      %1235 = vmatpush2.xpose.msra.mxu0 0.0
      %1236 = vmatprep.subr.mxu0 0.0
      %1237 = vmatpush2.xpose.msra.mxu0 0.0
      %1238 = vmatprep.subr.mxu0 0.0
      %1239 = vmatpush2.xpose.msra.mxu0 0.0
      %1240 = vmatprep.subr.mxu0 0.0
      %1241 = vmatpush2.xpose.msra.mxu0 0.0
      %1242 = vmatprep.subr.mxu0 0.0
      %1243 = vmatpush2.xpose.msra.mxu0 0.0
      %1244 = vmatprep.subr.mxu0 0.0
      %1245 = vmatpush2.xpose.msra.mxu0 0.0
      %1246 = vmatprep.subr.mxu0 0.0
      %1247 = vmatpush2.xpose.msra.mxu0 0.0
      %1248 = vmatprep.subr.mxu0 0.0
      %1249 = vmatpush2.xpose.msra.mxu0 0.0
      %1250 = vmatprep.subr.mxu0 0.0
      %1251 = vmatpush2.xpose.msra.mxu0 0.0
      %1252 = vmatprep.subr.mxu0 0.0
      %1253 = vmatpush2.xpose.msra.mxu0 0.0
      %1254 = vmatprep.subr.mxu0 0.0
      %1255 = vmatpush2.xpose.msra.mxu0 0.0
      %1256 = vmatprep.subr.mxu0 0.0
      %1257 = vmatpush2.xpose.msra.mxu0 0.0
      %1258 = vmatprep.subr.mxu0 0.0
      %1259 = vmatpush2.xpose.msra.mxu0 0.0
      %1260 = vmatprep.mubr.f32.mxu0 0.0
      %v1261 = vand.u32 %v749, 4294901760
      %1262 = vmatmul.mubr.f32.gmra.mxu0 %v1261
      %v1263 = vpop.f32.mrf.mxu0
      %v1264 = vadd.f32 %v1161, %v1263
      %v1265 = vpop.f32.mrf.mxu0
      %1266 = vmatprep.mubr.f32.mxu0 0.0
      %v1267 = vand.u32 %v752, 4294901760
      %1268 = vmatmul.mubr.f32.gmra.mxu0 %v1267
      %v1269 = vpop.f32.mrf.mxu0
      %v1270 = vadd.f32 %v1169, %v1269
      %v1271 = vpop.f32.mrf.mxu0
      %1272 = vdwg.mxu0
      %1273 = vmatprep.subr.mxu0 0.0
      %1274 = vmatpush1.xpose.msra.mxu0 0.0
      %1275 = vmatprep.subr.mxu0 0.0
      %1276 = vmatpush1.xpose.msra.mxu0 0.0
      %1277 = vmatprep.subr.mxu0 0.0
      %1278 = vmatpush1.xpose.msra.mxu0 0.0
      %1279 = vmatprep.subr.mxu0 0.0
      %1280 = vmatpush1.xpose.msra.mxu0 0.0
      %1281 = vmatprep.subr.mxu0 0.0
      %1282 = vmatpush1.xpose.msra.mxu0 0.0
      %1283 = vmatprep.subr.mxu0 0.0
      %1284 = vmatpush1.xpose.msra.mxu0 0.0
      %1285 = vmatprep.subr.mxu0 0.0
      %1286 = vmatpush1.xpose.msra.mxu0 0.0
      %1287 = vmatprep.subr.mxu0 0.0
      %1288 = vmatpush1.xpose.msra.mxu0 0.0
      %1289 = vmatprep.subr.mxu0 0.0
      %v1290 = vand.u32 %v776, 4294901760
      %1291 = vmatpush1.xpose.msra.mxu0 %v1290
      %1292 = vmatprep.subr.mxu0 0.0
      %v1293 = vand.u32 %v773, 4294901760
      %1294 = vmatpush1.xpose.msra.mxu0 %v1293
      %1295 = vmatprep.subr.mxu0 0.0
      %v1296 = vand.u32 %v770, 4294901760
      %1297 = vmatpush1.xpose.msra.mxu0 %v1296
      %1298 = vmatprep.subr.mxu0 0.0
      %v1299 = vand.u32 %v767, 4294901760
      %1300 = vmatpush1.xpose.msra.mxu0 %v1299
      %1301 = vmatprep.subr.mxu0 0.0
      %v1302 = vand.u32 %v764, 4294901760
      %1303 = vmatpush1.xpose.msra.mxu0 %v1302
      %1304 = vmatprep.subr.mxu0 0.0
      %v1305 = vand.u32 %v761, 4294901760
      %1306 = vmatpush1.xpose.msra.mxu0 %v1305
      %1307 = vmatprep.subr.mxu0 0.0
      %v1308 = vand.u32 %v758, 4294901760
      %1309 = vmatpush1.xpose.msra.mxu0 %v1308
      %1310 = vmatprep.subr.mxu0 0.0
      %v1311 = vand.u32 %v755, 4294901760
      %1312 = vmatpush1.xpose.msra.mxu0 %v1311
      %1313 = vmatprep.subr.mxu0 0.0
      %1314 = vmatpush2.xpose.msra.mxu0 0.0
      %1315 = vmatprep.subr.mxu0 0.0
      %1316 = vmatpush2.xpose.msra.mxu0 0.0
      %1317 = vmatprep.subr.mxu0 0.0
      %1318 = vmatpush2.xpose.msra.mxu0 0.0
      %1319 = vmatprep.subr.mxu0 0.0
      %1320 = vmatpush2.xpose.msra.mxu0 0.0
      %1321 = vmatprep.subr.mxu0 0.0
      %1322 = vmatpush2.xpose.msra.mxu0 0.0
      %1323 = vmatprep.subr.mxu0 0.0
      %1324 = vmatpush2.xpose.msra.mxu0 0.0
      %1325 = vmatprep.subr.mxu0 0.0
      %1326 = vmatpush2.xpose.msra.mxu0 0.0
      %1327 = vmatprep.subr.mxu0 0.0
      %1328 = vmatpush2.xpose.msra.mxu0 0.0
      %1329 = vmatprep.subr.mxu0 0.0
      %1330 = vmatpush2.xpose.msra.mxu0 0.0
      %1331 = vmatprep.subr.mxu0 0.0
      %1332 = vmatpush2.xpose.msra.mxu0 0.0
      %1333 = vmatprep.subr.mxu0 0.0
      %1334 = vmatpush2.xpose.msra.mxu0 0.0
      %1335 = vmatprep.subr.mxu0 0.0
      %1336 = vmatpush2.xpose.msra.mxu0 0.0
      %1337 = vmatprep.subr.mxu0 0.0
      %1338 = vmatpush2.xpose.msra.mxu0 0.0
      %1339 = vmatprep.subr.mxu0 0.0
      %1340 = vmatpush2.xpose.msra.mxu0 0.0
      %1341 = vmatprep.subr.mxu0 0.0
      %1342 = vmatpush2.xpose.msra.mxu0 0.0
      %1343 = vmatprep.subr.mxu0 0.0
      %1344 = vmatpush2.xpose.msra.mxu0 0.0
      %1345 = vmatprep.mubr.f32.mxu0 0.0
      %v1346 = vand.u32 %v749, 4294901760
      %1347 = vmatmul.mubr.f32.gmra.mxu0 %v1346
      %v1348 = vpop.f32.mrf.mxu0
      %v1349 = vadd.f32 %v1264, %v1348
      %v1350 = vpop.f32.mrf.mxu0
      %1351 = vmatprep.mubr.f32.mxu0 0.0
      %v1352 = vand.u32 %v752, 4294901760
      %1353 = vmatmul.mubr.f32.gmra.mxu0 %v1352
      %v1354 = vpop.f32.mrf.mxu0
      %v1355 = vadd.f32 %v1270, %v1354
      %v1356 = vpop.f32.mrf.mxu0
      %1357 = vdwg.mxu0
      %s1358 = scalar_lea.vmem %s1, %s718
      %v1359 = vld [vmem:[%s1358] sm:$0x1]
      %v1360 = vlaneseq
      %v1361 = vshrl.u32 %v1360, 7
      %v1362 = vsub.s32 0, %v1361
      %v1363 = vrot.slane %v1359, %v1362
      %vm1364 = vcmp.eq.s32.totalorder %v1363, %v36
      %vm1365 = vcmp.eq.s32.totalorder %v1363, %v37
      %v1366 = vsel %vm1364, 1, 0
      %v1367 = vsel %vm1365, 1, 0
      %v1368 = vcvt.s32.f32 %v1366
      %v1369 = vcvt.s32.f32 %v1367
      %v1370 = vlaneseq
      %v1371 = vshrl.u32 %v1370, 7
      %v1372 = vsub.s32 0, %v1371
      %v1373 = vrot.slane %v726, %v1372
      %vm1374 = vcmp.eq.s32.totalorder %v1373, %v36
      %vm1375 = vcmp.eq.s32.totalorder %v1373, %v37
      %v1376 = vsel %vm1374, 1, 0
      %v1377 = vsel %vm1375, 1, 0
      %v1378 = vcvt.s32.f32 %v1376
      %v1379 = vcvt.s32.f32 %v1377
      %v1381 = vsel %vm747, %v42, 0
      %v1384 = vsel %vm747, %v43, 0
      %1386 = vmatprep.subr.mxu0 0.0
      %1387 = vmatpush1.msra.mxu0 0.0
      %1388 = vmatprep.subr.mxu0 0.0
      %1389 = vmatpush1.msra.mxu0 0.0
      %1390 = vmatprep.subr.mxu0 0.0
      %1391 = vmatpush1.msra.mxu0 0.0
      %1392 = vmatprep.subr.mxu0 0.0
      %1393 = vmatpush1.msra.mxu0 0.0
      %1394 = vmatprep.subr.mxu0 0.0
      %1395 = vmatpush1.msra.mxu0 0.0
      %1396 = vmatprep.subr.mxu0 0.0
      %1397 = vmatpush1.msra.mxu0 0.0
      %1398 = vmatprep.subr.mxu0 0.0
      %1399 = vmatpush1.msra.mxu0 0.0
      %1400 = vmatprep.subr.mxu0 0.0
      %1401 = vmatpush1.msra.mxu0 0.0
      %1402 = vmatprep.subr.mxu0 0.0
      %1403 = vmatpush1.msra.mxu0 0.0
      %1404 = vmatprep.subr.mxu0 0.0
      %1405 = vmatpush1.msra.mxu0 0.0
      %1406 = vmatprep.subr.mxu0 0.0
      %1407 = vmatpush1.msra.mxu0 0.0
      %1408 = vmatprep.subr.mxu0 0.0
      %1409 = vmatpush1.msra.mxu0 0.0
      %1410 = vmatprep.subr.mxu0 0.0
      %1411 = vmatpush1.msra.mxu0 0.0
      %1412 = vmatprep.subr.mxu0 0.0
      %1413 = vmatpush1.msra.mxu0 0.0
      %1414 = vmatprep.subr.mxu0 0.0
      %v1415 = vand.u32 %v1379, 4294901760
      %1416 = vmatpush1.msra.mxu0 %v1415
      %1417 = vmatprep.subr.mxu0 0.0
      %v1418 = vand.u32 %v1378, 4294901760
      %1419 = vmatpush1.msra.mxu0 %v1418
      %1420 = vmatprep.subr.mxu0 0.0
      %1421 = vmatpush2.msra.mxu0 0.0
      %1422 = vmatprep.subr.mxu0 0.0
      %1423 = vmatpush2.msra.mxu0 0.0
      %1424 = vmatprep.subr.mxu0 0.0
      %1425 = vmatpush2.msra.mxu0 0.0
      %1426 = vmatprep.subr.mxu0 0.0
      %1427 = vmatpush2.msra.mxu0 0.0
      %1428 = vmatprep.subr.mxu0 0.0
      %1429 = vmatpush2.msra.mxu0 0.0
      %1430 = vmatprep.subr.mxu0 0.0
      %1431 = vmatpush2.msra.mxu0 0.0
      %1432 = vmatprep.subr.mxu0 0.0
      %1433 = vmatpush2.msra.mxu0 0.0
      %1434 = vmatprep.subr.mxu0 0.0
      %1435 = vmatpush2.msra.mxu0 0.0
      %1436 = vmatprep.subr.mxu0 0.0
      %1437 = vmatpush2.msra.mxu0 0.0
      %1438 = vmatprep.subr.mxu0 0.0
      %1439 = vmatpush2.msra.mxu0 0.0
      %1440 = vmatprep.subr.mxu0 0.0
      %1441 = vmatpush2.msra.mxu0 0.0
      %1442 = vmatprep.subr.mxu0 0.0
      %1443 = vmatpush2.msra.mxu0 0.0
      %1444 = vmatprep.subr.mxu0 0.0
      %1445 = vmatpush2.msra.mxu0 0.0
      %1446 = vmatprep.subr.mxu0 0.0
      %1447 = vmatpush2.msra.mxu0 0.0
      %1448 = vmatprep.subr.mxu0 0.0
      %1449 = vmatpush2.msra.mxu0 0.0
      %1450 = vmatprep.subr.mxu0 0.0
      %1451 = vmatpush2.msra.mxu0 0.0
      %1452 = vmatprep.mubr.f32.mxu0 0.0
      %v1453 = vand.u32 %v1381, 4294901760
      %v1454 = vsub.f32 %v1381, %v1453
      %v1455 = vand.u32 %v1454, 4294901760
      %v1456 = vsub.f32 %v1454, %v1455
      %v1457 = vand.u32 %v1456, 4294901760
      %1458 = vmatmul.mubr.f32.gmra.mxu0 %v1457
      %v1459 = vpop.f32.mrf.mxu0
      %v1460 = vadd.f32 0.0, %v1459
      %v1461 = vpop.f32.mrf.mxu0
      %1462 = vmatprep.mubr.f32.mxu0 0.0
      %v1463 = vand.u32 %v1384, 4294901760
      %v1464 = vsub.f32 %v1384, %v1463
      %v1465 = vand.u32 %v1464, 4294901760
      %v1466 = vsub.f32 %v1464, %v1465
      %v1467 = vand.u32 %v1466, 4294901760
      %1468 = vmatmul.mubr.f32.gmra.mxu0 %v1467
      %v1469 = vpop.f32.mrf.mxu0
      %v1470 = vadd.f32 0.0, %v1469
      %v1471 = vpop.f32.mrf.mxu0
      %1472 = vdwg.mxu0
      %1473 = vmatprep.subr.mxu0 0.0
      %1474 = vmatpush1.msra.mxu0 0.0
      %1475 = vmatprep.subr.mxu0 0.0
      %1476 = vmatpush1.msra.mxu0 0.0
      %1477 = vmatprep.subr.mxu0 0.0
      %1478 = vmatpush1.msra.mxu0 0.0
      %1479 = vmatprep.subr.mxu0 0.0
      %1480 = vmatpush1.msra.mxu0 0.0
      %1481 = vmatprep.subr.mxu0 0.0
      %1482 = vmatpush1.msra.mxu0 0.0
      %1483 = vmatprep.subr.mxu0 0.0
      %1484 = vmatpush1.msra.mxu0 0.0
      %1485 = vmatprep.subr.mxu0 0.0
      %1486 = vmatpush1.msra.mxu0 0.0
      %1487 = vmatprep.subr.mxu0 0.0
      %1488 = vmatpush1.msra.mxu0 0.0
      %1489 = vmatprep.subr.mxu0 0.0
      %1490 = vmatpush1.msra.mxu0 0.0
      %1491 = vmatprep.subr.mxu0 0.0
      %1492 = vmatpush1.msra.mxu0 0.0
      %1493 = vmatprep.subr.mxu0 0.0
      %1494 = vmatpush1.msra.mxu0 0.0
      %1495 = vmatprep.subr.mxu0 0.0
      %1496 = vmatpush1.msra.mxu0 0.0
      %1497 = vmatprep.subr.mxu0 0.0
      %1498 = vmatpush1.msra.mxu0 0.0
      %1499 = vmatprep.subr.mxu0 0.0
      %1500 = vmatpush1.msra.mxu0 0.0
      %1501 = vmatprep.subr.mxu0 0.0
      %v1502 = vand.u32 %v1379, 4294901760
      %v1503 = vsub.f32 %v1379, %v1502
      %v1504 = vand.u32 %v1503, 4294901760
      %v1505 = vsub.f32 %v1503, %v1504
      %v1506 = vand.u32 %v1505, 4294901760
      %1507 = vmatpush1.msra.mxu0 %v1506
      %1508 = vmatprep.subr.mxu0 0.0
      %v1509 = vand.u32 %v1378, 4294901760
      %v1510 = vsub.f32 %v1378, %v1509
      %v1511 = vand.u32 %v1510, 4294901760
      %v1512 = vsub.f32 %v1510, %v1511
      %v1513 = vand.u32 %v1512, 4294901760
      %1514 = vmatpush1.msra.mxu0 %v1513
      %1515 = vmatprep.subr.mxu0 0.0
      %1516 = vmatpush2.msra.mxu0 0.0
      %1517 = vmatprep.subr.mxu0 0.0
      %1518 = vmatpush2.msra.mxu0 0.0
      %1519 = vmatprep.subr.mxu0 0.0
      %1520 = vmatpush2.msra.mxu0 0.0
      %1521 = vmatprep.subr.mxu0 0.0
      %1522 = vmatpush2.msra.mxu0 0.0
      %1523 = vmatprep.subr.mxu0 0.0
      %1524 = vmatpush2.msra.mxu0 0.0
      %1525 = vmatprep.subr.mxu0 0.0
      %1526 = vmatpush2.msra.mxu0 0.0
      %1527 = vmatprep.subr.mxu0 0.0
      %1528 = vmatpush2.msra.mxu0 0.0
      %1529 = vmatprep.subr.mxu0 0.0
      %1530 = vmatpush2.msra.mxu0 0.0
      %1531 = vmatprep.subr.mxu0 0.0
      %1532 = vmatpush2.msra.mxu0 0.0
      %1533 = vmatprep.subr.mxu0 0.0
      %1534 = vmatpush2.msra.mxu0 0.0
      %1535 = vmatprep.subr.mxu0 0.0
      %1536 = vmatpush2.msra.mxu0 0.0
      %1537 = vmatprep.subr.mxu0 0.0
      %1538 = vmatpush2.msra.mxu0 0.0
      %1539 = vmatprep.subr.mxu0 0.0
      %1540 = vmatpush2.msra.mxu0 0.0
      %1541 = vmatprep.subr.mxu0 0.0
      %1542 = vmatpush2.msra.mxu0 0.0
      %1543 = vmatprep.subr.mxu0 0.0
      %1544 = vmatpush2.msra.mxu0 0.0
      %1545 = vmatprep.subr.mxu0 0.0
      %1546 = vmatpush2.msra.mxu0 0.0
      %1547 = vmatprep.mubr.f32.mxu0 0.0
      %v1548 = vand.u32 %v1381, 4294901760
      %1549 = vmatmul.mubr.f32.gmra.mxu0 %v1548
      %v1550 = vpop.f32.mrf.mxu0
      %v1551 = vadd.f32 %v1460, %v1550
      %v1552 = vpop.f32.mrf.mxu0
      %1553 = vmatprep.mubr.f32.mxu0 0.0
      %v1554 = vand.u32 %v1384, 4294901760
      %1555 = vmatmul.mubr.f32.gmra.mxu0 %v1554
      %v1556 = vpop.f32.mrf.mxu0
      %v1557 = vadd.f32 %v1470, %v1556
      %v1558 = vpop.f32.mrf.mxu0
      %1559 = vdwg.mxu0
      %1560 = vmatprep.subr.mxu0 0.0
      %1561 = vmatpush1.msra.mxu0 0.0
      %1562 = vmatprep.subr.mxu0 0.0
      %1563 = vmatpush1.msra.mxu0 0.0
      %1564 = vmatprep.subr.mxu0 0.0
      %1565 = vmatpush1.msra.mxu0 0.0
      %1566 = vmatprep.subr.mxu0 0.0
      %1567 = vmatpush1.msra.mxu0 0.0
      %1568 = vmatprep.subr.mxu0 0.0
      %1569 = vmatpush1.msra.mxu0 0.0
      %1570 = vmatprep.subr.mxu0 0.0
      %1571 = vmatpush1.msra.mxu0 0.0
      %1572 = vmatprep.subr.mxu0 0.0
      %1573 = vmatpush1.msra.mxu0 0.0
      %1574 = vmatprep.subr.mxu0 0.0
      %1575 = vmatpush1.msra.mxu0 0.0
      %1576 = vmatprep.subr.mxu0 0.0
      %1577 = vmatpush1.msra.mxu0 0.0
      %1578 = vmatprep.subr.mxu0 0.0
      %1579 = vmatpush1.msra.mxu0 0.0
      %1580 = vmatprep.subr.mxu0 0.0
      %1581 = vmatpush1.msra.mxu0 0.0
      %1582 = vmatprep.subr.mxu0 0.0
      %1583 = vmatpush1.msra.mxu0 0.0
      %1584 = vmatprep.subr.mxu0 0.0
      %1585 = vmatpush1.msra.mxu0 0.0
      %1586 = vmatprep.subr.mxu0 0.0
      %1587 = vmatpush1.msra.mxu0 0.0
      %1588 = vmatprep.subr.mxu0 0.0
      %v1589 = vand.u32 %v1379, 4294901760
      %v1590 = vsub.f32 %v1379, %v1589
      %1591 = vmatpush1.msra.mxu0 %v1590
      %1592 = vmatprep.subr.mxu0 0.0
      %v1593 = vand.u32 %v1378, 4294901760
      %v1594 = vsub.f32 %v1378, %v1593
      %1595 = vmatpush1.msra.mxu0 %v1594
      %1596 = vmatprep.subr.mxu0 0.0
      %1597 = vmatpush2.msra.mxu0 0.0
      %1598 = vmatprep.subr.mxu0 0.0
      %1599 = vmatpush2.msra.mxu0 0.0
      %1600 = vmatprep.subr.mxu0 0.0
      %1601 = vmatpush2.msra.mxu0 0.0
      %1602 = vmatprep.subr.mxu0 0.0
      %1603 = vmatpush2.msra.mxu0 0.0
      %1604 = vmatprep.subr.mxu0 0.0
      %1605 = vmatpush2.msra.mxu0 0.0
      %1606 = vmatprep.subr.mxu0 0.0
      %1607 = vmatpush2.msra.mxu0 0.0
      %1608 = vmatprep.subr.mxu0 0.0
      %1609 = vmatpush2.msra.mxu0 0.0
      %1610 = vmatprep.subr.mxu0 0.0
      %1611 = vmatpush2.msra.mxu0 0.0
      %1612 = vmatprep.subr.mxu0 0.0
      %1613 = vmatpush2.msra.mxu0 0.0
      %1614 = vmatprep.subr.mxu0 0.0
      %1615 = vmatpush2.msra.mxu0 0.0
      %1616 = vmatprep.subr.mxu0 0.0
      %1617 = vmatpush2.msra.mxu0 0.0
      %1618 = vmatprep.subr.mxu0 0.0
      %1619 = vmatpush2.msra.mxu0 0.0
      %1620 = vmatprep.subr.mxu0 0.0
      %1621 = vmatpush2.msra.mxu0 0.0
      %1622 = vmatprep.subr.mxu0 0.0
      %1623 = vmatpush2.msra.mxu0 0.0
      %1624 = vmatprep.subr.mxu0 0.0
      %1625 = vmatpush2.msra.mxu0 0.0
      %1626 = vmatprep.subr.mxu0 0.0
      %1627 = vmatpush2.msra.mxu0 0.0
      %1628 = vmatprep.mubr.f32.mxu0 0.0
      %v1629 = vand.u32 %v1381, 4294901760
      %v1630 = vsub.f32 %v1381, %v1629
      %1631 = vmatmul.mubr.f32.gmra.mxu0 %v1630
      %v1632 = vpop.f32.mrf.mxu0
      %v1633 = vadd.f32 %v1551, %v1632
      %v1634 = vpop.f32.mrf.mxu0
      %1635 = vmatprep.mubr.f32.mxu0 0.0
      %v1636 = vand.u32 %v1384, 4294901760
      %v1637 = vsub.f32 %v1384, %v1636
      %1638 = vmatmul.mubr.f32.gmra.mxu0 %v1637
      %v1639 = vpop.f32.mrf.mxu0
      %v1640 = vadd.f32 %v1557, %v1639
      %v1641 = vpop.f32.mrf.mxu0
      %1642 = vdwg.mxu0
      %1643 = vmatprep.subr.mxu0 0.0
      %1644 = vmatpush1.msra.mxu0 0.0
      %1645 = vmatprep.subr.mxu0 0.0
      %1646 = vmatpush1.msra.mxu0 0.0
      %1647 = vmatprep.subr.mxu0 0.0
      %1648 = vmatpush1.msra.mxu0 0.0
      %1649 = vmatprep.subr.mxu0 0.0
      %1650 = vmatpush1.msra.mxu0 0.0
      %1651 = vmatprep.subr.mxu0 0.0
      %1652 = vmatpush1.msra.mxu0 0.0
      %1653 = vmatprep.subr.mxu0 0.0
      %1654 = vmatpush1.msra.mxu0 0.0
      %1655 = vmatprep.subr.mxu0 0.0
      %1656 = vmatpush1.msra.mxu0 0.0
      %1657 = vmatprep.subr.mxu0 0.0
      %1658 = vmatpush1.msra.mxu0 0.0
      %1659 = vmatprep.subr.mxu0 0.0
      %1660 = vmatpush1.msra.mxu0 0.0
      %1661 = vmatprep.subr.mxu0 0.0
      %1662 = vmatpush1.msra.mxu0 0.0
      %1663 = vmatprep.subr.mxu0 0.0
      %1664 = vmatpush1.msra.mxu0 0.0
      %1665 = vmatprep.subr.mxu0 0.0
      %1666 = vmatpush1.msra.mxu0 0.0
      %1667 = vmatprep.subr.mxu0 0.0
      %1668 = vmatpush1.msra.mxu0 0.0
      %1669 = vmatprep.subr.mxu0 0.0
      %1670 = vmatpush1.msra.mxu0 0.0
      %1671 = vmatprep.subr.mxu0 0.0
      %v1672 = vand.u32 %v1379, 4294901760
      %1673 = vmatpush1.msra.mxu0 %v1672
      %1674 = vmatprep.subr.mxu0 0.0
      %v1675 = vand.u32 %v1378, 4294901760
      %1676 = vmatpush1.msra.mxu0 %v1675
      %1677 = vmatprep.subr.mxu0 0.0
      %1678 = vmatpush2.msra.mxu0 0.0
      %1679 = vmatprep.subr.mxu0 0.0
      %1680 = vmatpush2.msra.mxu0 0.0
      %1681 = vmatprep.subr.mxu0 0.0
      %1682 = vmatpush2.msra.mxu0 0.0
      %1683 = vmatprep.subr.mxu0 0.0
      %1684 = vmatpush2.msra.mxu0 0.0
      %1685 = vmatprep.subr.mxu0 0.0
      %1686 = vmatpush2.msra.mxu0 0.0
      %1687 = vmatprep.subr.mxu0 0.0
      %1688 = vmatpush2.msra.mxu0 0.0
      %1689 = vmatprep.subr.mxu0 0.0
      %1690 = vmatpush2.msra.mxu0 0.0
      %1691 = vmatprep.subr.mxu0 0.0
      %1692 = vmatpush2.msra.mxu0 0.0
      %1693 = vmatprep.subr.mxu0 0.0
      %1694 = vmatpush2.msra.mxu0 0.0
      %1695 = vmatprep.subr.mxu0 0.0
      %1696 = vmatpush2.msra.mxu0 0.0
      %1697 = vmatprep.subr.mxu0 0.0
      %1698 = vmatpush2.msra.mxu0 0.0
      %1699 = vmatprep.subr.mxu0 0.0
      %1700 = vmatpush2.msra.mxu0 0.0
      %1701 = vmatprep.subr.mxu0 0.0
      %1702 = vmatpush2.msra.mxu0 0.0
      %1703 = vmatprep.subr.mxu0 0.0
      %1704 = vmatpush2.msra.mxu0 0.0
      %1705 = vmatprep.subr.mxu0 0.0
      %1706 = vmatpush2.msra.mxu0 0.0
      %1707 = vmatprep.subr.mxu0 0.0
      %1708 = vmatpush2.msra.mxu0 0.0
      %1709 = vmatprep.mubr.f32.mxu0 0.0
      %v1710 = vand.u32 %v1381, 4294901760
      %v1711 = vsub.f32 %v1381, %v1710
      %v1712 = vand.u32 %v1711, 4294901760
      %1713 = vmatmul.mubr.f32.gmra.mxu0 %v1712
      %v1714 = vpop.f32.mrf.mxu0
      %v1715 = vadd.f32 %v1633, %v1714
      %v1716 = vpop.f32.mrf.mxu0
      %1717 = vmatprep.mubr.f32.mxu0 0.0
      %v1718 = vand.u32 %v1384, 4294901760
      %v1719 = vsub.f32 %v1384, %v1718
      %v1720 = vand.u32 %v1719, 4294901760
      %1721 = vmatmul.mubr.f32.gmra.mxu0 %v1720
      %v1722 = vpop.f32.mrf.mxu0
      %v1723 = vadd.f32 %v1640, %v1722
      %v1724 = vpop.f32.mrf.mxu0
      %1725 = vdwg.mxu0
      %1726 = vmatprep.subr.mxu0 0.0
      %1727 = vmatpush1.msra.mxu0 0.0
      %1728 = vmatprep.subr.mxu0 0.0
      %1729 = vmatpush1.msra.mxu0 0.0
      %1730 = vmatprep.subr.mxu0 0.0
      %1731 = vmatpush1.msra.mxu0 0.0
      %1732 = vmatprep.subr.mxu0 0.0
      %1733 = vmatpush1.msra.mxu0 0.0
      %1734 = vmatprep.subr.mxu0 0.0
      %1735 = vmatpush1.msra.mxu0 0.0
      %1736 = vmatprep.subr.mxu0 0.0
      %1737 = vmatpush1.msra.mxu0 0.0
      %1738 = vmatprep.subr.mxu0 0.0
      %1739 = vmatpush1.msra.mxu0 0.0
      %1740 = vmatprep.subr.mxu0 0.0
      %1741 = vmatpush1.msra.mxu0 0.0
      %1742 = vmatprep.subr.mxu0 0.0
      %1743 = vmatpush1.msra.mxu0 0.0
      %1744 = vmatprep.subr.mxu0 0.0
      %1745 = vmatpush1.msra.mxu0 0.0
      %1746 = vmatprep.subr.mxu0 0.0
      %1747 = vmatpush1.msra.mxu0 0.0
      %1748 = vmatprep.subr.mxu0 0.0
      %1749 = vmatpush1.msra.mxu0 0.0
      %1750 = vmatprep.subr.mxu0 0.0
      %1751 = vmatpush1.msra.mxu0 0.0
      %1752 = vmatprep.subr.mxu0 0.0
      %1753 = vmatpush1.msra.mxu0 0.0
      %1754 = vmatprep.subr.mxu0 0.0
      %v1755 = vand.u32 %v1379, 4294901760
      %v1756 = vsub.f32 %v1379, %v1755
      %v1757 = vand.u32 %v1756, 4294901760
      %1758 = vmatpush1.msra.mxu0 %v1757
      %1759 = vmatprep.subr.mxu0 0.0
      %v1760 = vand.u32 %v1378, 4294901760
      %v1761 = vsub.f32 %v1378, %v1760
      %v1762 = vand.u32 %v1761, 4294901760
      %1763 = vmatpush1.msra.mxu0 %v1762
      %1764 = vmatprep.subr.mxu0 0.0
      %1765 = vmatpush2.msra.mxu0 0.0
      %1766 = vmatprep.subr.mxu0 0.0
      %1767 = vmatpush2.msra.mxu0 0.0
      %1768 = vmatprep.subr.mxu0 0.0
      %1769 = vmatpush2.msra.mxu0 0.0
      %1770 = vmatprep.subr.mxu0 0.0
      %1771 = vmatpush2.msra.mxu0 0.0
      %1772 = vmatprep.subr.mxu0 0.0
      %1773 = vmatpush2.msra.mxu0 0.0
      %1774 = vmatprep.subr.mxu0 0.0
      %1775 = vmatpush2.msra.mxu0 0.0
      %1776 = vmatprep.subr.mxu0 0.0
      %1777 = vmatpush2.msra.mxu0 0.0
      %1778 = vmatprep.subr.mxu0 0.0
      %1779 = vmatpush2.msra.mxu0 0.0
      %1780 = vmatprep.subr.mxu0 0.0
      %1781 = vmatpush2.msra.mxu0 0.0
      %1782 = vmatprep.subr.mxu0 0.0
      %1783 = vmatpush2.msra.mxu0 0.0
      %1784 = vmatprep.subr.mxu0 0.0
      %1785 = vmatpush2.msra.mxu0 0.0
      %1786 = vmatprep.subr.mxu0 0.0
      %1787 = vmatpush2.msra.mxu0 0.0
      %1788 = vmatprep.subr.mxu0 0.0
      %1789 = vmatpush2.msra.mxu0 0.0
      %1790 = vmatprep.subr.mxu0 0.0
      %1791 = vmatpush2.msra.mxu0 0.0
      %1792 = vmatprep.subr.mxu0 0.0
      %1793 = vmatpush2.msra.mxu0 0.0
      %1794 = vmatprep.subr.mxu0 0.0
      %1795 = vmatpush2.msra.mxu0 0.0
      %1796 = vmatprep.mubr.f32.mxu0 0.0
      %v1797 = vand.u32 %v1381, 4294901760
      %1798 = vmatmul.mubr.f32.gmra.mxu0 %v1797
      %v1799 = vpop.f32.mrf.mxu0
      %v1800 = vadd.f32 %v1715, %v1799
      %v1801 = vpop.f32.mrf.mxu0
      %1802 = vmatprep.mubr.f32.mxu0 0.0
      %v1803 = vand.u32 %v1384, 4294901760
      %1804 = vmatmul.mubr.f32.gmra.mxu0 %v1803
      %v1805 = vpop.f32.mrf.mxu0
      %v1806 = vadd.f32 %v1723, %v1805
      %v1807 = vpop.f32.mrf.mxu0
      %1808 = vdwg.mxu0
      %1809 = vmatprep.subr.mxu0 0.0
      %1810 = vmatpush1.msra.mxu0 0.0
      %1811 = vmatprep.subr.mxu0 0.0
      %1812 = vmatpush1.msra.mxu0 0.0
      %1813 = vmatprep.subr.mxu0 0.0
      %1814 = vmatpush1.msra.mxu0 0.0
      %1815 = vmatprep.subr.mxu0 0.0
      %1816 = vmatpush1.msra.mxu0 0.0
      %1817 = vmatprep.subr.mxu0 0.0
      %1818 = vmatpush1.msra.mxu0 0.0
      %1819 = vmatprep.subr.mxu0 0.0
      %1820 = vmatpush1.msra.mxu0 0.0
      %1821 = vmatprep.subr.mxu0 0.0
      %1822 = vmatpush1.msra.mxu0 0.0
      %1823 = vmatprep.subr.mxu0 0.0
      %1824 = vmatpush1.msra.mxu0 0.0
      %1825 = vmatprep.subr.mxu0 0.0
      %1826 = vmatpush1.msra.mxu0 0.0
      %1827 = vmatprep.subr.mxu0 0.0
      %1828 = vmatpush1.msra.mxu0 0.0
      %1829 = vmatprep.subr.mxu0 0.0
      %1830 = vmatpush1.msra.mxu0 0.0
      %1831 = vmatprep.subr.mxu0 0.0
      %1832 = vmatpush1.msra.mxu0 0.0
      %1833 = vmatprep.subr.mxu0 0.0
      %1834 = vmatpush1.msra.mxu0 0.0
      %1835 = vmatprep.subr.mxu0 0.0
      %1836 = vmatpush1.msra.mxu0 0.0
      %1837 = vmatprep.subr.mxu0 0.0
      %v1838 = vand.u32 %v1379, 4294901760
      %1839 = vmatpush1.msra.mxu0 %v1838
      %1840 = vmatprep.subr.mxu0 0.0
      %v1841 = vand.u32 %v1378, 4294901760
      %1842 = vmatpush1.msra.mxu0 %v1841
      %1843 = vmatprep.subr.mxu0 0.0
      %1844 = vmatpush2.msra.mxu0 0.0
      %1845 = vmatprep.subr.mxu0 0.0
      %1846 = vmatpush2.msra.mxu0 0.0
      %1847 = vmatprep.subr.mxu0 0.0
      %1848 = vmatpush2.msra.mxu0 0.0
      %1849 = vmatprep.subr.mxu0 0.0
      %1850 = vmatpush2.msra.mxu0 0.0
      %1851 = vmatprep.subr.mxu0 0.0
      %1852 = vmatpush2.msra.mxu0 0.0
      %1853 = vmatprep.subr.mxu0 0.0
      %1854 = vmatpush2.msra.mxu0 0.0
      %1855 = vmatprep.subr.mxu0 0.0
      %1856 = vmatpush2.msra.mxu0 0.0
      %1857 = vmatprep.subr.mxu0 0.0
      %1858 = vmatpush2.msra.mxu0 0.0
      %1859 = vmatprep.subr.mxu0 0.0
      %1860 = vmatpush2.msra.mxu0 0.0
      %1861 = vmatprep.subr.mxu0 0.0
      %1862 = vmatpush2.msra.mxu0 0.0
      %1863 = vmatprep.subr.mxu0 0.0
      %1864 = vmatpush2.msra.mxu0 0.0
      %1865 = vmatprep.subr.mxu0 0.0
      %1866 = vmatpush2.msra.mxu0 0.0
      %1867 = vmatprep.subr.mxu0 0.0
      %1868 = vmatpush2.msra.mxu0 0.0
      %1869 = vmatprep.subr.mxu0 0.0
      %1870 = vmatpush2.msra.mxu0 0.0
      %1871 = vmatprep.subr.mxu0 0.0
      %1872 = vmatpush2.msra.mxu0 0.0
      %1873 = vmatprep.subr.mxu0 0.0
      %1874 = vmatpush2.msra.mxu0 0.0
      %1875 = vmatprep.mubr.f32.mxu0 0.0
      %v1876 = vand.u32 %v1381, 4294901760
      %1877 = vmatmul.mubr.f32.gmra.mxu0 %v1876
      %v1878 = vpop.f32.mrf.mxu0
      %v1879 = vadd.f32 %v1800, %v1878
      %v1880 = vpop.f32.mrf.mxu0
      %1881 = vmatprep.mubr.f32.mxu0 0.0
      %v1882 = vand.u32 %v1384, 4294901760
      %1883 = vmatmul.mubr.f32.gmra.mxu0 %v1882
      %v1884 = vpop.f32.mrf.mxu0
      %v1885 = vadd.f32 %v1806, %v1884
      %v1886 = vpop.f32.mrf.mxu0
      %1887 = vdwg.mxu0
      %v1888 = vmul.f32 %v1879, %v1368
      %v1889 = vmul.f32 %v1885, %v1369
      %vm1890 = vcmask 523264
      %v1891 = vsel %vm1890, %v1888, 0.0
      %v1892 = vsel %vm1890, %v1889, 0.0
      %v1893 = vadd.f32 %v1891, %v1892
      %v1894 = vrot.slane %v1893, 4
      %v1895 = vadd.f32 %v1893, %v1894
      %v1896 = vrot.slane %v1895, 2
      %v1897 = vadd.f32 %v1895, %v1896
      %v1898 = vrot.slane %v1897, 1
      %v1899 = vadd.f32 %v1897, %v1898
      %v1900 = vmul.f32 %v1349, %v1368
      %v1901 = vmul.f32 %v1355, %v1369
      %v1902 = vsel %vm1890, %v1900, 0.0
      %v1903 = vsel %vm1890, %v1901, 0.0
      %v1904 = vadd.f32 %v1902, %v1903
      %v1905 = vrot.slane %v1904, 4
      %v1906 = vadd.f32 %v1904, %v1905
      %v1907 = vrot.slane %v1906, 2
      %v1908 = vadd.f32 %v1906, %v1907
      %v1909 = vrot.slane %v1908, 1
      %v1910 = vadd.f32 %v1908, %v1909
      %v1911 = vadd.f32 %v1899, %v1910
      %v1912 = vmul.f32 %v1911, %v736
      %v1913 = vadd.f32 %v725, %v1912
      %vm1914 = vcmp.gt.f32.partialorder %v736, 0.0
      %v1915 = vsel %vm1914, %v1359, %v727
      %v1916 = vsel %vm1890, %v723, -inf
      %v1917 = vsel %vm1890, %v724, -inf
      %v1918 = vmax.f32 %v1916, %v1917
      %v1919 = vrot.slane %v1918, 4
      %v1920 = vmax.f32 %v1918, %v1919
      %v1921 = vrot.slane %v1920, 2
      %v1922 = vmax.f32 %v1920, %v1921
      %v1923 = vrot.slane %v1922, 1
      %v1924 = vmax.f32 %v1922, %v1923
      %v1925 = vsub.f32 %v723, %v1924
      %v1926 = vsub.f32 %v724, %v1924
      %v1927 = vmul.f32 %v1925, 1.442695
      %v1928 = vpow.pop %v1927
      %v1929 = vmul.f32 %v1926, 1.442695
      %v1930 = vpow.pop %v1929
      %v1932 = vsel %vm747, %v44, 0
      %v1935 = vsel %vm747, %v45, 0
      %1937 = vmatprep.subr.mxu0 0.0
      %1938 = vmatpush1.msra.mxu0 0.0
      %1939 = vmatprep.subr.mxu0 0.0
      %1940 = vmatpush1.msra.mxu0 0.0
      %1941 = vmatprep.subr.mxu0 0.0
      %1942 = vmatpush1.msra.mxu0 0.0
      %1943 = vmatprep.subr.mxu0 0.0
      %1944 = vmatpush1.msra.mxu0 0.0
      %1945 = vmatprep.subr.mxu0 0.0
      %1946 = vmatpush1.msra.mxu0 0.0
      %1947 = vmatprep.subr.mxu0 0.0
      %1948 = vmatpush1.msra.mxu0 0.0
      %1949 = vmatprep.subr.mxu0 0.0
      %1950 = vmatpush1.msra.mxu0 0.0
      %1951 = vmatprep.subr.mxu0 0.0
      %1952 = vmatpush1.msra.mxu0 0.0
      %1953 = vmatprep.subr.mxu0 0.0
      %1954 = vmatpush1.msra.mxu0 0.0
      %1955 = vmatprep.subr.mxu0 0.0
      %1956 = vmatpush1.msra.mxu0 0.0
      %1957 = vmatprep.subr.mxu0 0.0
      %1958 = vmatpush1.msra.mxu0 0.0
      %1959 = vmatprep.subr.mxu0 0.0
      %1960 = vmatpush1.msra.mxu0 0.0
      %1961 = vmatprep.subr.mxu0 0.0
      %1962 = vmatpush1.msra.mxu0 0.0
      %1963 = vmatprep.subr.mxu0 0.0
      %1964 = vmatpush1.msra.mxu0 0.0
      %1965 = vmatprep.subr.mxu0 0.0
      %v1966 = vand.u32 %v1930, 4294901760
      %1967 = vmatpush1.msra.mxu0 %v1966
      %1968 = vmatprep.subr.mxu0 0.0
      %v1969 = vand.u32 %v1928, 4294901760
      %1970 = vmatpush1.msra.mxu0 %v1969
      %1971 = vmatprep.subr.mxu0 0.0
      %1972 = vmatpush2.msra.mxu0 0.0
      %1973 = vmatprep.subr.mxu0 0.0
      %1974 = vmatpush2.msra.mxu0 0.0
      %1975 = vmatprep.subr.mxu0 0.0
      %1976 = vmatpush2.msra.mxu0 0.0
      %1977 = vmatprep.subr.mxu0 0.0
      %1978 = vmatpush2.msra.mxu0 0.0
      %1979 = vmatprep.subr.mxu0 0.0
      %1980 = vmatpush2.msra.mxu0 0.0
      %1981 = vmatprep.subr.mxu0 0.0
      %1982 = vmatpush2.msra.mxu0 0.0
      %1983 = vmatprep.subr.mxu0 0.0
      %1984 = vmatpush2.msra.mxu0 0.0
      %1985 = vmatprep.subr.mxu0 0.0
      %1986 = vmatpush2.msra.mxu0 0.0
      %1987 = vmatprep.subr.mxu0 0.0
      %1988 = vmatpush2.msra.mxu0 0.0
      %1989 = vmatprep.subr.mxu0 0.0
      %1990 = vmatpush2.msra.mxu0 0.0
      %1991 = vmatprep.subr.mxu0 0.0
      %1992 = vmatpush2.msra.mxu0 0.0
      %1993 = vmatprep.subr.mxu0 0.0
      %1994 = vmatpush2.msra.mxu0 0.0
      %1995 = vmatprep.subr.mxu0 0.0
      %1996 = vmatpush2.msra.mxu0 0.0
      %1997 = vmatprep.subr.mxu0 0.0
      %1998 = vmatpush2.msra.mxu0 0.0
      %1999 = vmatprep.subr.mxu0 0.0
      %2000 = vmatpush2.msra.mxu0 0.0
      %2001 = vmatprep.subr.mxu0 0.0
      %2002 = vmatpush2.msra.mxu0 0.0
      %2003 = vmatprep.mubr.f32.mxu0 0.0
      %v2004 = vand.u32 %v1932, 4294901760
      %v2005 = vsub.f32 %v1932, %v2004
      %v2006 = vand.u32 %v2005, 4294901760
      %v2007 = vsub.f32 %v2005, %v2006
      %v2008 = vand.u32 %v2007, 4294901760
      %2009 = vmatmul.mubr.f32.gmra.mxu0 %v2008
      %v2010 = vpop.f32.mrf.mxu0
      %v2011 = vadd.f32 0.0, %v2010
      %v2012 = vpop.f32.mrf.mxu0
      %2013 = vmatprep.mubr.f32.mxu0 0.0
      %v2014 = vand.u32 %v1935, 4294901760
      %v2015 = vsub.f32 %v1935, %v2014
      %v2016 = vand.u32 %v2015, 4294901760
      %v2017 = vsub.f32 %v2015, %v2016
      %v2018 = vand.u32 %v2017, 4294901760
      %2019 = vmatmul.mubr.f32.gmra.mxu0 %v2018
      %v2020 = vpop.f32.mrf.mxu0
      %v2021 = vadd.f32 0.0, %v2020
      %v2022 = vpop.f32.mrf.mxu0
      %2023 = vdwg.mxu0
      %2024 = vmatprep.subr.mxu0 0.0
      %2025 = vmatpush1.msra.mxu0 0.0
      %2026 = vmatprep.subr.mxu0 0.0
      %2027 = vmatpush1.msra.mxu0 0.0
      %2028 = vmatprep.subr.mxu0 0.0
      %2029 = vmatpush1.msra.mxu0 0.0
      %2030 = vmatprep.subr.mxu0 0.0
      %2031 = vmatpush1.msra.mxu0 0.0
      %2032 = vmatprep.subr.mxu0 0.0
      %2033 = vmatpush1.msra.mxu0 0.0
      %2034 = vmatprep.subr.mxu0 0.0
      %2035 = vmatpush1.msra.mxu0 0.0
      %2036 = vmatprep.subr.mxu0 0.0
      %2037 = vmatpush1.msra.mxu0 0.0
      %2038 = vmatprep.subr.mxu0 0.0
      %2039 = vmatpush1.msra.mxu0 0.0
      %2040 = vmatprep.subr.mxu0 0.0
      %2041 = vmatpush1.msra.mxu0 0.0
      %2042 = vmatprep.subr.mxu0 0.0
      %2043 = vmatpush1.msra.mxu0 0.0
      %2044 = vmatprep.subr.mxu0 0.0
      %2045 = vmatpush1.msra.mxu0 0.0
      %2046 = vmatprep.subr.mxu0 0.0
      %2047 = vmatpush1.msra.mxu0 0.0
      %2048 = vmatprep.subr.mxu0 0.0
      %2049 = vmatpush1.msra.mxu0 0.0
      %2050 = vmatprep.subr.mxu0 0.0
      %2051 = vmatpush1.msra.mxu0 0.0
      %2052 = vmatprep.subr.mxu0 0.0
      %v2053 = vand.u32 %v1930, 4294901760
      %v2054 = vsub.f32 %v1930, %v2053
      %v2055 = vand.u32 %v2054, 4294901760
      %v2056 = vsub.f32 %v2054, %v2055
      %v2057 = vand.u32 %v2056, 4294901760
      %2058 = vmatpush1.msra.mxu0 %v2057
      %2059 = vmatprep.subr.mxu0 0.0
      %v2060 = vand.u32 %v1928, 4294901760
      %v2061 = vsub.f32 %v1928, %v2060
      %v2062 = vand.u32 %v2061, 4294901760
      %v2063 = vsub.f32 %v2061, %v2062
      %v2064 = vand.u32 %v2063, 4294901760
      %2065 = vmatpush1.msra.mxu0 %v2064
      %2066 = vmatprep.subr.mxu0 0.0
      %2067 = vmatpush2.msra.mxu0 0.0
      %2068 = vmatprep.subr.mxu0 0.0
      %2069 = vmatpush2.msra.mxu0 0.0
      %2070 = vmatprep.subr.mxu0 0.0
      %2071 = vmatpush2.msra.mxu0 0.0
      %2072 = vmatprep.subr.mxu0 0.0
      %2073 = vmatpush2.msra.mxu0 0.0
      %2074 = vmatprep.subr.mxu0 0.0
      %2075 = vmatpush2.msra.mxu0 0.0
      %2076 = vmatprep.subr.mxu0 0.0
      %2077 = vmatpush2.msra.mxu0 0.0
      %2078 = vmatprep.subr.mxu0 0.0
      %2079 = vmatpush2.msra.mxu0 0.0
      %2080 = vmatprep.subr.mxu0 0.0
      %2081 = vmatpush2.msra.mxu0 0.0
      %2082 = vmatprep.subr.mxu0 0.0
      %2083 = vmatpush2.msra.mxu0 0.0
      %2084 = vmatprep.subr.mxu0 0.0
      %2085 = vmatpush2.msra.mxu0 0.0
      %2086 = vmatprep.subr.mxu0 0.0
      %2087 = vmatpush2.msra.mxu0 0.0
      %2088 = vmatprep.subr.mxu0 0.0
      %2089 = vmatpush2.msra.mxu0 0.0
      %2090 = vmatprep.subr.mxu0 0.0
      %2091 = vmatpush2.msra.mxu0 0.0
      %2092 = vmatprep.subr.mxu0 0.0
      %2093 = vmatpush2.msra.mxu0 0.0
      %2094 = vmatprep.subr.mxu0 0.0
      %2095 = vmatpush2.msra.mxu0 0.0
      %2096 = vmatprep.subr.mxu0 0.0
      %2097 = vmatpush2.msra.mxu0 0.0
      %2098 = vmatprep.mubr.f32.mxu0 0.0
      %v2099 = vand.u32 %v1932, 4294901760
      %2100 = vmatmul.mubr.f32.gmra.mxu0 %v2099
      %v2101 = vpop.f32.mrf.mxu0
      %v2102 = vadd.f32 %v2011, %v2101
      %v2103 = vpop.f32.mrf.mxu0
      %2104 = vmatprep.mubr.f32.mxu0 0.0
      %v2105 = vand.u32 %v1935, 4294901760
      %2106 = vmatmul.mubr.f32.gmra.mxu0 %v2105
      %v2107 = vpop.f32.mrf.mxu0
      %v2108 = vadd.f32 %v2021, %v2107
      %v2109 = vpop.f32.mrf.mxu0
      %2110 = vdwg.mxu0
      %2111 = vmatprep.subr.mxu0 0.0
      %2112 = vmatpush1.msra.mxu0 0.0
      %2113 = vmatprep.subr.mxu0 0.0
      %2114 = vmatpush1.msra.mxu0 0.0
      %2115 = vmatprep.subr.mxu0 0.0
      %2116 = vmatpush1.msra.mxu0 0.0
      %2117 = vmatprep.subr.mxu0 0.0
      %2118 = vmatpush1.msra.mxu0 0.0
      %2119 = vmatprep.subr.mxu0 0.0
      %2120 = vmatpush1.msra.mxu0 0.0
      %2121 = vmatprep.subr.mxu0 0.0
      %2122 = vmatpush1.msra.mxu0 0.0
      %2123 = vmatprep.subr.mxu0 0.0
      %2124 = vmatpush1.msra.mxu0 0.0
      %2125 = vmatprep.subr.mxu0 0.0
      %2126 = vmatpush1.msra.mxu0 0.0
      %2127 = vmatprep.subr.mxu0 0.0
      %2128 = vmatpush1.msra.mxu0 0.0
      %2129 = vmatprep.subr.mxu0 0.0
      %2130 = vmatpush1.msra.mxu0 0.0
      %2131 = vmatprep.subr.mxu0 0.0
      %2132 = vmatpush1.msra.mxu0 0.0
      %2133 = vmatprep.subr.mxu0 0.0
      %2134 = vmatpush1.msra.mxu0 0.0
      %2135 = vmatprep.subr.mxu0 0.0
      %2136 = vmatpush1.msra.mxu0 0.0
      %2137 = vmatprep.subr.mxu0 0.0
      %2138 = vmatpush1.msra.mxu0 0.0
      %2139 = vmatprep.subr.mxu0 0.0
      %v2140 = vand.u32 %v1930, 4294901760
      %v2141 = vsub.f32 %v1930, %v2140
      %2142 = vmatpush1.msra.mxu0 %v2141
      %2143 = vmatprep.subr.mxu0 0.0
      %v2144 = vand.u32 %v1928, 4294901760
      %v2145 = vsub.f32 %v1928, %v2144
      %2146 = vmatpush1.msra.mxu0 %v2145
      %2147 = vmatprep.subr.mxu0 0.0
      %2148 = vmatpush2.msra.mxu0 0.0
      %2149 = vmatprep.subr.mxu0 0.0
      %2150 = vmatpush2.msra.mxu0 0.0
      %2151 = vmatprep.subr.mxu0 0.0
      %2152 = vmatpush2.msra.mxu0 0.0
      %2153 = vmatprep.subr.mxu0 0.0
      %2154 = vmatpush2.msra.mxu0 0.0
      %2155 = vmatprep.subr.mxu0 0.0
      %2156 = vmatpush2.msra.mxu0 0.0
      %2157 = vmatprep.subr.mxu0 0.0
      %2158 = vmatpush2.msra.mxu0 0.0
      %2159 = vmatprep.subr.mxu0 0.0
      %2160 = vmatpush2.msra.mxu0 0.0
      %2161 = vmatprep.subr.mxu0 0.0
      %2162 = vmatpush2.msra.mxu0 0.0
      %2163 = vmatprep.subr.mxu0 0.0
      %2164 = vmatpush2.msra.mxu0 0.0
      %2165 = vmatprep.subr.mxu0 0.0
      %2166 = vmatpush2.msra.mxu0 0.0
      %2167 = vmatprep.subr.mxu0 0.0
      %2168 = vmatpush2.msra.mxu0 0.0
      %2169 = vmatprep.subr.mxu0 0.0
      %2170 = vmatpush2.msra.mxu0 0.0
      %2171 = vmatprep.subr.mxu0 0.0
      %2172 = vmatpush2.msra.mxu0 0.0
      %2173 = vmatprep.subr.mxu0 0.0
      %2174 = vmatpush2.msra.mxu0 0.0
      %2175 = vmatprep.subr.mxu0 0.0
      %2176 = vmatpush2.msra.mxu0 0.0
      %2177 = vmatprep.subr.mxu0 0.0
      %2178 = vmatpush2.msra.mxu0 0.0
      %2179 = vmatprep.mubr.f32.mxu0 0.0
      %v2180 = vand.u32 %v1932, 4294901760
      %v2181 = vsub.f32 %v1932, %v2180
      %2182 = vmatmul.mubr.f32.gmra.mxu0 %v2181
      %v2183 = vpop.f32.mrf.mxu0
      %v2184 = vadd.f32 %v2102, %v2183
      %v2185 = vpop.f32.mrf.mxu0
      %2186 = vmatprep.mubr.f32.mxu0 0.0
      %v2187 = vand.u32 %v1935, 4294901760
      %v2188 = vsub.f32 %v1935, %v2187
      %2189 = vmatmul.mubr.f32.gmra.mxu0 %v2188
      %v2190 = vpop.f32.mrf.mxu0
      %v2191 = vadd.f32 %v2108, %v2190
      %v2192 = vpop.f32.mrf.mxu0
      %2193 = vdwg.mxu0
      %2194 = vmatprep.subr.mxu0 0.0
      %2195 = vmatpush1.msra.mxu0 0.0
      %2196 = vmatprep.subr.mxu0 0.0
      %2197 = vmatpush1.msra.mxu0 0.0
      %2198 = vmatprep.subr.mxu0 0.0
      %2199 = vmatpush1.msra.mxu0 0.0
      %2200 = vmatprep.subr.mxu0 0.0
      %2201 = vmatpush1.msra.mxu0 0.0
      %2202 = vmatprep.subr.mxu0 0.0
      %2203 = vmatpush1.msra.mxu0 0.0
      %2204 = vmatprep.subr.mxu0 0.0
      %2205 = vmatpush1.msra.mxu0 0.0
      %2206 = vmatprep.subr.mxu0 0.0
      %2207 = vmatpush1.msra.mxu0 0.0
      %2208 = vmatprep.subr.mxu0 0.0
      %2209 = vmatpush1.msra.mxu0 0.0
      %2210 = vmatprep.subr.mxu0 0.0
      %2211 = vmatpush1.msra.mxu0 0.0
      %2212 = vmatprep.subr.mxu0 0.0
      %2213 = vmatpush1.msra.mxu0 0.0
      %2214 = vmatprep.subr.mxu0 0.0
      %2215 = vmatpush1.msra.mxu0 0.0
      %2216 = vmatprep.subr.mxu0 0.0
      %2217 = vmatpush1.msra.mxu0 0.0
      %2218 = vmatprep.subr.mxu0 0.0
      %2219 = vmatpush1.msra.mxu0 0.0
      %2220 = vmatprep.subr.mxu0 0.0
      %2221 = vmatpush1.msra.mxu0 0.0
      %2222 = vmatprep.subr.mxu0 0.0
      %v2223 = vand.u32 %v1930, 4294901760
      %2224 = vmatpush1.msra.mxu0 %v2223
      %2225 = vmatprep.subr.mxu0 0.0
      %v2226 = vand.u32 %v1928, 4294901760
      %2227 = vmatpush1.msra.mxu0 %v2226
      %2228 = vmatprep.subr.mxu0 0.0
      %2229 = vmatpush2.msra.mxu0 0.0
      %2230 = vmatprep.subr.mxu0 0.0
      %2231 = vmatpush2.msra.mxu0 0.0
      %2232 = vmatprep.subr.mxu0 0.0
      %2233 = vmatpush2.msra.mxu0 0.0
      %2234 = vmatprep.subr.mxu0 0.0
      %2235 = vmatpush2.msra.mxu0 0.0
      %2236 = vmatprep.subr.mxu0 0.0
      %2237 = vmatpush2.msra.mxu0 0.0
      %2238 = vmatprep.subr.mxu0 0.0
      %2239 = vmatpush2.msra.mxu0 0.0
      %2240 = vmatprep.subr.mxu0 0.0
      %2241 = vmatpush2.msra.mxu0 0.0
      %2242 = vmatprep.subr.mxu0 0.0
      %2243 = vmatpush2.msra.mxu0 0.0
      %2244 = vmatprep.subr.mxu0 0.0
      %2245 = vmatpush2.msra.mxu0 0.0
      %2246 = vmatprep.subr.mxu0 0.0
      %2247 = vmatpush2.msra.mxu0 0.0
      %2248 = vmatprep.subr.mxu0 0.0
      %2249 = vmatpush2.msra.mxu0 0.0
      %2250 = vmatprep.subr.mxu0 0.0
      %2251 = vmatpush2.msra.mxu0 0.0
      %2252 = vmatprep.subr.mxu0 0.0
      %2253 = vmatpush2.msra.mxu0 0.0
      %2254 = vmatprep.subr.mxu0 0.0
      %2255 = vmatpush2.msra.mxu0 0.0
      %2256 = vmatprep.subr.mxu0 0.0
      %2257 = vmatpush2.msra.mxu0 0.0
      %2258 = vmatprep.subr.mxu0 0.0
      %2259 = vmatpush2.msra.mxu0 0.0
      %2260 = vmatprep.mubr.f32.mxu0 0.0
      %v2261 = vand.u32 %v1932, 4294901760
      %v2262 = vsub.f32 %v1932, %v2261
      %v2263 = vand.u32 %v2262, 4294901760
      %2264 = vmatmul.mubr.f32.gmra.mxu0 %v2263
      %v2265 = vpop.f32.mrf.mxu0
      %v2266 = vadd.f32 %v2184, %v2265
      %v2267 = vpop.f32.mrf.mxu0
      %2268 = vmatprep.mubr.f32.mxu0 0.0
      %v2269 = vand.u32 %v1935, 4294901760
      %v2270 = vsub.f32 %v1935, %v2269
      %v2271 = vand.u32 %v2270, 4294901760
      %2272 = vmatmul.mubr.f32.gmra.mxu0 %v2271
      %v2273 = vpop.f32.mrf.mxu0
      %v2274 = vadd.f32 %v2191, %v2273
      %v2275 = vpop.f32.mrf.mxu0
      %2276 = vdwg.mxu0
      %2277 = vmatprep.subr.mxu0 0.0
      %2278 = vmatpush1.msra.mxu0 0.0
      %2279 = vmatprep.subr.mxu0 0.0
      %2280 = vmatpush1.msra.mxu0 0.0
      %2281 = vmatprep.subr.mxu0 0.0
      %2282 = vmatpush1.msra.mxu0 0.0
      %2283 = vmatprep.subr.mxu0 0.0
      %2284 = vmatpush1.msra.mxu0 0.0
      %2285 = vmatprep.subr.mxu0 0.0
      %2286 = vmatpush1.msra.mxu0 0.0
      %2287 = vmatprep.subr.mxu0 0.0
      %2288 = vmatpush1.msra.mxu0 0.0
      %2289 = vmatprep.subr.mxu0 0.0
      %2290 = vmatpush1.msra.mxu0 0.0
      %2291 = vmatprep.subr.mxu0 0.0
      %2292 = vmatpush1.msra.mxu0 0.0
      %2293 = vmatprep.subr.mxu0 0.0
      %2294 = vmatpush1.msra.mxu0 0.0
      %2295 = vmatprep.subr.mxu0 0.0
      %2296 = vmatpush1.msra.mxu0 0.0
      %2297 = vmatprep.subr.mxu0 0.0
      %2298 = vmatpush1.msra.mxu0 0.0
      %2299 = vmatprep.subr.mxu0 0.0
      %2300 = vmatpush1.msra.mxu0 0.0
      %2301 = vmatprep.subr.mxu0 0.0
      %2302 = vmatpush1.msra.mxu0 0.0
      %2303 = vmatprep.subr.mxu0 0.0
      %2304 = vmatpush1.msra.mxu0 0.0
      %2305 = vmatprep.subr.mxu0 0.0
      %v2306 = vand.u32 %v1930, 4294901760
      %v2307 = vsub.f32 %v1930, %v2306
      %v2308 = vand.u32 %v2307, 4294901760
      %2309 = vmatpush1.msra.mxu0 %v2308
      %2310 = vmatprep.subr.mxu0 0.0
      %v2311 = vand.u32 %v1928, 4294901760
      %v2312 = vsub.f32 %v1928, %v2311
      %v2313 = vand.u32 %v2312, 4294901760
      %2314 = vmatpush1.msra.mxu0 %v2313
      %2315 = vmatprep.subr.mxu0 0.0
      %2316 = vmatpush2.msra.mxu0 0.0
      %2317 = vmatprep.subr.mxu0 0.0
      %2318 = vmatpush2.msra.mxu0 0.0
      %2319 = vmatprep.subr.mxu0 0.0
      %2320 = vmatpush2.msra.mxu0 0.0
      %2321 = vmatprep.subr.mxu0 0.0
      %2322 = vmatpush2.msra.mxu0 0.0
      %2323 = vmatprep.subr.mxu0 0.0
      %2324 = vmatpush2.msra.mxu0 0.0
      %2325 = vmatprep.subr.mxu0 0.0
      %2326 = vmatpush2.msra.mxu0 0.0
      %2327 = vmatprep.subr.mxu0 0.0
      %2328 = vmatpush2.msra.mxu0 0.0
      %2329 = vmatprep.subr.mxu0 0.0
      %2330 = vmatpush2.msra.mxu0 0.0
      %2331 = vmatprep.subr.mxu0 0.0
      %2332 = vmatpush2.msra.mxu0 0.0
      %2333 = vmatprep.subr.mxu0 0.0
      %2334 = vmatpush2.msra.mxu0 0.0
      %2335 = vmatprep.subr.mxu0 0.0
      %2336 = vmatpush2.msra.mxu0 0.0
      %2337 = vmatprep.subr.mxu0 0.0
      %2338 = vmatpush2.msra.mxu0 0.0
      %2339 = vmatprep.subr.mxu0 0.0
      %2340 = vmatpush2.msra.mxu0 0.0
      %2341 = vmatprep.subr.mxu0 0.0
      %2342 = vmatpush2.msra.mxu0 0.0
      %2343 = vmatprep.subr.mxu0 0.0
      %2344 = vmatpush2.msra.mxu0 0.0
      %2345 = vmatprep.subr.mxu0 0.0
      %2346 = vmatpush2.msra.mxu0 0.0
      %2347 = vmatprep.mubr.f32.mxu0 0.0
      %v2348 = vand.u32 %v1932, 4294901760
      %2349 = vmatmul.mubr.f32.gmra.mxu0 %v2348
      %v2350 = vpop.f32.mrf.mxu0
      %v2351 = vadd.f32 %v2266, %v2350
      %v2352 = vpop.f32.mrf.mxu0
      %2353 = vmatprep.mubr.f32.mxu0 0.0
      %v2354 = vand.u32 %v1935, 4294901760
      %2355 = vmatmul.mubr.f32.gmra.mxu0 %v2354
      %v2356 = vpop.f32.mrf.mxu0
      %v2357 = vadd.f32 %v2274, %v2356
      %v2358 = vpop.f32.mrf.mxu0
      %2359 = vdwg.mxu0
      %2360 = vmatprep.subr.mxu0 0.0
      %2361 = vmatpush1.msra.mxu0 0.0
      %2362 = vmatprep.subr.mxu0 0.0
      %2363 = vmatpush1.msra.mxu0 0.0
      %2364 = vmatprep.subr.mxu0 0.0
      %2365 = vmatpush1.msra.mxu0 0.0
      %2366 = vmatprep.subr.mxu0 0.0
      %2367 = vmatpush1.msra.mxu0 0.0
      %2368 = vmatprep.subr.mxu0 0.0
      %2369 = vmatpush1.msra.mxu0 0.0
      %2370 = vmatprep.subr.mxu0 0.0
      %2371 = vmatpush1.msra.mxu0 0.0
      %2372 = vmatprep.subr.mxu0 0.0
      %2373 = vmatpush1.msra.mxu0 0.0
      %2374 = vmatprep.subr.mxu0 0.0
      %2375 = vmatpush1.msra.mxu0 0.0
      %2376 = vmatprep.subr.mxu0 0.0
      %2377 = vmatpush1.msra.mxu0 0.0
      %2378 = vmatprep.subr.mxu0 0.0
      %2379 = vmatpush1.msra.mxu0 0.0
      %2380 = vmatprep.subr.mxu0 0.0
      %2381 = vmatpush1.msra.mxu0 0.0
      %2382 = vmatprep.subr.mxu0 0.0
      %2383 = vmatpush1.msra.mxu0 0.0
      %2384 = vmatprep.subr.mxu0 0.0
      %2385 = vmatpush1.msra.mxu0 0.0
      %2386 = vmatprep.subr.mxu0 0.0
      %2387 = vmatpush1.msra.mxu0 0.0
      %2388 = vmatprep.subr.mxu0 0.0
      %v2389 = vand.u32 %v1930, 4294901760
      %2390 = vmatpush1.msra.mxu0 %v2389
      %2391 = vmatprep.subr.mxu0 0.0
      %v2392 = vand.u32 %v1928, 4294901760
      %2393 = vmatpush1.msra.mxu0 %v2392
      %2394 = vmatprep.subr.mxu0 0.0
      %2395 = vmatpush2.msra.mxu0 0.0
      %2396 = vmatprep.subr.mxu0 0.0
      %2397 = vmatpush2.msra.mxu0 0.0
      %2398 = vmatprep.subr.mxu0 0.0
      %2399 = vmatpush2.msra.mxu0 0.0
      %2400 = vmatprep.subr.mxu0 0.0
      %2401 = vmatpush2.msra.mxu0 0.0
      %2402 = vmatprep.subr.mxu0 0.0
      %2403 = vmatpush2.msra.mxu0 0.0
      %2404 = vmatprep.subr.mxu0 0.0
      %2405 = vmatpush2.msra.mxu0 0.0
      %2406 = vmatprep.subr.mxu0 0.0
      %2407 = vmatpush2.msra.mxu0 0.0
      %2408 = vmatprep.subr.mxu0 0.0
      %2409 = vmatpush2.msra.mxu0 0.0
      %2410 = vmatprep.subr.mxu0 0.0
      %2411 = vmatpush2.msra.mxu0 0.0
      %2412 = vmatprep.subr.mxu0 0.0
      %2413 = vmatpush2.msra.mxu0 0.0
      %2414 = vmatprep.subr.mxu0 0.0
      %2415 = vmatpush2.msra.mxu0 0.0
      %2416 = vmatprep.subr.mxu0 0.0
      %2417 = vmatpush2.msra.mxu0 0.0
      %2418 = vmatprep.subr.mxu0 0.0
      %2419 = vmatpush2.msra.mxu0 0.0
      %2420 = vmatprep.subr.mxu0 0.0
      %2421 = vmatpush2.msra.mxu0 0.0
      %2422 = vmatprep.subr.mxu0 0.0
      %2423 = vmatpush2.msra.mxu0 0.0
      %2424 = vmatprep.subr.mxu0 0.0
      %2425 = vmatpush2.msra.mxu0 0.0
      %2426 = vmatprep.mubr.f32.mxu0 0.0
      %v2427 = vand.u32 %v1932, 4294901760
      %2428 = vmatmul.mubr.f32.gmra.mxu0 %v2427
      %v2429 = vpop.f32.mrf.mxu0
      %v2430 = vadd.f32 %v2351, %v2429
      %v2431 = vpop.f32.mrf.mxu0
      %2432 = vmatprep.mubr.f32.mxu0 0.0
      %v2433 = vand.u32 %v1935, 4294901760
      %2434 = vmatmul.mubr.f32.gmra.mxu0 %v2433
      %v2435 = vpop.f32.mrf.mxu0
      %v2436 = vadd.f32 %v2357, %v2435
      %v2437 = vpop.f32.mrf.mxu0
      %2438 = vdwg.mxu0
      %2440 = vset.pattern.permute.xlu0 0
      %2441 = vperm.xlu0 %2440, %v46
      %v2442 = vpop.permute.xlu0 %2441
      %2445 = vset.pattern.permute.xlu0 0
      %2446 = vperm.xlu0 %2445, %v47
      %v2447 = vpop.permute.xlu0 %2446
      %v2449 = vadd.f32 %v1924, %v2442
      %v2450 = vadd.f32 %v1924, %v2447
      %v2451 = vmax.f32 %v2430, 1.1754944e-38
      %v2452 = vmax.f32 %v2436, 1.1754944e-38
      %v2453 = vlog2.pop %v2451
      %v2454 = vmul.f32 %v2453, 0.6931472
      %v2455 = vlog2.pop %v2452
      %v2456 = vmul.f32 %v2455, 0.6931472
      %v2457 = vadd.f32 %v2449, %v2454
      %v2458 = vadd.f32 %v2450, %v2456
      %v2459 = vadd.f32 %v2457, %v1349
      %v2460 = vadd.f32 %v2458, %v1355
      %v2461 = vsel %vm1914, 1, 0
      %v2462 = vlaneseq
      %v2463 = vshrl.u32 %v2462, 7
      %v2464 = vsub.s32 0, %v2463
      %v2465 = vrot.slane %v2461, %v2464
      %vm2466 = vcmp.eq.s32.totalorder %v2465, 1
      %v2467 = vsel %vm2466, %v2459, %v723
      %v2468 = vsel %vm2466, %v2460, %v724
    $region46: #{tpu_custom_call.1} parent=1 // loop_footer
      %s722 = sadd.s32 1, %s718
    $region47: #{tpu_custom_call.1} parent=1 // loop_footer_branch
      %717 = sbr.rel target = $region43
    $region48: #{tpu_custom_call.1} parent=1 // loop_exit
      _
    %vm2469 = vcmask 523264
    %2470 = vst.msk [vmem:[#allocation2] sm:$0xff] %vm2469, %v723
    %2471 = vst.msk [vmem:[#allocation2 + $0x8] sm:$0xff] %vm2469, %v724
    %vm2472 = vcmask 516096
    %2473 = vst.msk [vmem:[#allocation3] sm:$0x1] %vm2472, %v725
    %2474 = vst.msk [vmem:[#allocation4] sm:$0x1] %vm2472, %v726
    %2475 = vst.msk [vmem:[#allocation5] sm:$0x1] %vm2472, %v727
    // Predicated region
    $region49: #{tpu_custom_call.1} parent=1 // pred_check
      %p2476 = pneg %p48
    $region50: #{tpu_custom_call.1} parent=1 // pred_check_branch
      %2478 = sbr.rel (%p2476) target = $region52
    $region51: #{tpu_custom_call.1} parent=1 // pred_region
      %2480 = vset.pattern.permute.xlu0 0
      %2481 = vperm.xlu0 %2480, %v40
      %v2482 = vpop.permute.xlu0 %2481
      %2485 = vset.pattern.permute.xlu0 0
      %2486 = vperm.xlu0 %2485, %v41
      %v2487 = vpop.permute.xlu0 %2486
      %v2489 = vadd.f32 %v723, %v2482
      %v2490 = vadd.f32 %v724, %v2487
      %v2491 = vsel %vm2469, %v2489, -inf
      %v2492 = vsel %vm2469, %v2490, -inf
      %v2493 = vmax.f32 %v2491, %v2492
      %v2494 = vrot.slane %v2493, 4
      %v2495 = vmax.f32 %v2493, %v2494
      %v2496 = vrot.slane %v2495, 2
      %v2497 = vmax.f32 %v2495, %v2496
      %v2498 = vrot.slane %v2497, 1
      %v2499 = vmax.f32 %v2497, %v2498
      %v2500 = vsub.f32 %v2489, %v2499
      %v2501 = vsub.f32 %v2490, %v2499
      %v2502 = vmul.f32 %v2500, 1.442695
      %v2503 = vpow.pop %v2502
      %v2504 = vmul.f32 %v2501, 1.442695
      %v2505 = vpow.pop %v2504
      %v2506 = vsel %vm2469, %v2503, 0.0
      %v2507 = vsel %vm2469, %v2505, 0.0
      %v2508 = vadd.f32 %v2506, %v2507
      %v2509 = vrot.slane %v2508, 4
      %v2510 = vadd.f32 %v2508, %v2509
      %v2511 = vrot.slane %v2510, 2
      %v2512 = vadd.f32 %v2510, %v2511
      %v2513 = vrot.slane %v2512, 1
      %v2514 = vadd.f32 %v2512, %v2513
      %v2515 = vlog2.pop %v2514
      %v2516 = vmul.f32 %v2515, 0.6931472
      %v2517 = vadd.f32 %v2499, %v2516
      %v2518 = vlaneseq
      %v2519 = vshrl.u32 %v2518, 7
      %v2520 = vsub.s32 0, %v2519
      %v2521 = vrot.slane %v727, %v2520
      %vm2522 = vcmp.eq.s32.totalorder %v2521, %v36
      %vm2523 = vcmp.eq.s32.totalorder %v2521, %v37
      %v2524 = vsel %vm2522, 1, 0
      %v2525 = vsel %vm2523, 1, 0
      %v2526 = vcvt.s32.f32 %v2524
      %v2527 = vcvt.s32.f32 %v2525
      %v2528 = vmul.f32 %v2526, %v2482
      %v2529 = vmul.f32 %v2527, %v2487
      %v2530 = vsel %vm2469, %v2528, 0.0
      %v2531 = vsel %vm2469, %v2529, 0.0
      %v2532 = vadd.f32 %v2530, %v2531
      %v2533 = vrot.slane %v2532, 4
      %v2534 = vadd.f32 %v2532, %v2533
      %v2535 = vrot.slane %v2534, 2
      %v2536 = vadd.f32 %v2534, %v2535
      %v2537 = vrot.slane %v2536, 1
      %v2538 = vadd.f32 %v2536, %v2537
      %v2539 = vadd.f32 %v725, %v2538
      %v2540 = vsub.f32 %v2539, %v2517
      %2541 = vst.msk [vmem:[#allocation6] sm:$0x1] %vm2472, %v2540
    $region52: #{tpu_custom_call.1} parent=1 // pred_fallthru
      _
    // Predicated region
    $region53: #{tpu_custom_call.1} parent=1 // pred_check
      _
    $region54: #{tpu_custom_call.1} parent=1 // pred_check_branch
      %2543 = sbr.rel (0) target = $region56
    $region55: #{tpu_custom_call.1} parent=1 // pred_region
      %s2545 = ssub.s32 16, 16
      %2546 = vsyncadd [#allocation7], %s2545
      %s2548 = sshll.u32 [#allocation6], 4
      %s2549 = int_to_ptr.vmem [resolvable:$true] %s2548
      %2551 = dma.vmem_to_hbm [thread:$0]  %s2549, 16, %s9, [#allocation7]
    $region56: #{tpu_custom_call.1} parent=1 // pred_fallthru
      _
    // Predicated region
    $region57: #{tpu_custom_call.1} parent=1 // pred_check
      _
    $region58: #{tpu_custom_call.1} parent=1 // pred_check_branch
      %2553 = sbr.rel (0) target = $region60
    $region59: #{tpu_custom_call.1} parent=1 // pred_region
      %2554 = dma.done [#allocation7], 16
    $region60: #{tpu_custom_call.1} parent=1 // pred_fallthru
      _
    %2555 = vsyncpa [#allocation7], 1

</llo_original>
